<compile_context>
chip_gen: v6e
topology: v6e:2x2x1
jax: 0.10.0
libtpu: 0.0.40
codegen_flags: <defaults>
</compile_context>

<pallas_src>
import numpy as np
import jax
import jax.numpy as jnp
from jax import lax
from jax.experimental import pallas as pl
from jax.experimental.pallas import tpu as pltpu

# ---- small, synthetic hyper-parameters ----
B = 2                       # batch
C = 32                      # dim
T = 128                     # time steps (multiple of 128 and power of two)
L = B * T                   # folded lane dimension
SCALE = 4
WIDTH = C // SCALE          # 8
NUMS = SCALE - 1            # 3
K = 3                       # kernel_size
DIL = 1                     # dilation
PAD = ((K - 1) // 2) * DIL  # 1
CB = C // 2                 # SEModule bottleneck (synthetic choice)
EPS = 1e-5

# ---- packed f32 parameter slab layout: (SLAB_ROWS, 128), all offsets 8-aligned ----
LANES = 128
ROW_W1 = 0                          # (C, C)        proj1 weight
ROW_WC = ROW_W1 + C                 # (NUMS*W, K*W) fused res2 conv weights
ROW_W2 = ROW_WC + NUMS * WIDTH      # (C, C)        proj2 weight
ROW_WSE1 = ROW_W2 + C               # (CB, C)       SE squeeze weight
ROW_WSE2 = ROW_WSE1 + CB            # (C, CB)       SE excite weight
ROW_VEC = ROW_WSE2 + C              # (C, 16)       per-channel bias / folded-BN table
SLAB_ROWS = ROW_VEC + C             # 168


def local_block_kernel(x_ref, slab_ref, o_ref):
    f32 = jnp.float32
    bf16 = jnp.bfloat16

    # ---- unpack parameters from the single VMEM slab (static ref slices) ----
    w1 = slab_ref[ROW_W1:ROW_W1 + C, :C]                              # (C, C)
    w2 = slab_ref[ROW_W2:ROW_W2 + C, :C]                              # (C, C)
    wse1 = slab_ref[ROW_WSE1:ROW_WSE1 + CB, :C]                       # (CB, C)
    wse2 = slab_ref[ROW_WSE2:ROW_WSE2 + C, :CB]                       # (C, CB)
    vecs = slab_ref[ROW_VEC:ROW_VEC + C, :16]                         # (C, 16)
    b1, s1, t1 = vecs[:, 0:1], vecs[:, 1:2], vecs[:, 2:3]
    b2, s3, t3 = vecs[:, 3:4], vecs[:, 4:5], vecs[:, 5:6]
    bse1, bse2 = vecs[:CB, 6:7], vecs[:, 7:8]
    bc, sc, tc = vecs[:, 8:9], vecs[:, 9:10], vecs[:, 10:11]

    # Fold batch into lanes only for the proj1 RHS (128-lane-aligned concat);
    # the skip connection re-reads x_ref[b] in the epilogue instead.
    x = jnp.concatenate([x_ref[b] for b in range(B)], axis=-1)        # (C, L)

    # proj1 (1x1 conv == channel matmul, bf16 operands / f32 accum) + ReLU + BN1
    h = jnp.dot(w1.astype(bf16), x.astype(bf16),
                preferred_element_type=f32) + b1
    h = jnp.maximum(h, 0.0) * s1 + t1                                 # (C, L) f32

    # Boundary masks for the temporal shifts of the folded layout, built from a
    # lane iota (no DMA): zero any lane whose conv source index falls outside
    # its own batch segment (this also kills the roll wrap-around lanes).
    lane = lax.broadcasted_iota(jnp.int32, (1, L), 1)
    tpos = jnp.bitwise_and(lane, T - 1)                               # lane % T
    tap_masks = {}
    for k in range(K):
        off = k * DIL - PAD
        if off != 0:
            ok = jnp.logical_and(tpos + off >= 0, tpos + off < T)
            tap_masks[k] = ok.astype(f32)                             # (1, L)

    # res2conv1d: hierarchical groups; the K taps of a group are ONE matmul.
    outs = []
    sp = None
    for i in range(NUMS):
        spx_i = h[i * WIDTH:(i + 1) * WIDTH, :]
        sp = spx_i if i == 0 else sp + spx_i
        taps = []
        for k in range(K):
            off = k * DIL - PAD                 # conv reads sp[:, t + off]
            if off == 0:
                taps.append(sp)
            else:
                rolled = jnp.roll(sp, shift=-off, axis=1)             # lane shift
                taps.append(rolled * tap_masks[k])
        stacked = jnp.concatenate(taps, axis=0)                       # (K*W, L)
        wc_i = slab_ref[ROW_WC + i * WIDTH:ROW_WC + (i + 1) * WIDTH, :K * WIDTH]
        acc = jnp.dot(wc_i.astype(bf16), stacked.astype(bf16),
                      preferred_element_type=f32)
        acc = acc + bc[i * WIDTH:(i + 1) * WIDTH]                     # bias
        acc = jnp.maximum(acc, 0.0)
        acc = (acc * sc[i * WIDTH:(i + 1) * WIDTH]                    # BN scale
               + tc[i * WIDTH:(i + 1) * WIDTH])                       # BN shift
        sp = acc
        outs.append(acc)
    outs.append(h[NUMS * WIDTH:, :])                                  # pass-through group

    # proj2 as ONE (C,C)x(C,L) matmul on the sublane-aligned concat, ReLU, BN3.
    ycat = jnp.concatenate(outs, axis=0)                              # (C, L)
    y = jnp.dot(w2.astype(bf16), ycat.astype(bf16),
                preferred_element_type=f32) + b2
    y = jnp.maximum(y, 0.0) * s3 + t3                                 # (C, L) f32

    # SEModule, batched over B: the per-segment temporal mean is one matmul
    # against an iota-built (L, B) pooling matrix; then two N=B matmuls.
    row = lax.broadcasted_iota(jnp.int32, (L, B), 0)
    col = lax.broadcasted_iota(jnp.int32, (L, B), 1)
    seg = row - col * T
    pool = jnp.where(jnp.logical_and(seg >= 0, seg < T),
                     1.0 / T, 0.0).astype(f32)                        # (L, B)
    pooled = jnp.dot(y.astype(bf16), pool.astype(bf16),
                     preferred_element_type=f32)                      # (C, B)
    z = jnp.maximum(
        jnp.dot(wse1.astype(bf16), pooled.astype(bf16),
                preferred_element_type=f32) + bse1, 0.0)              # (CB, B)
    g = jax.nn.sigmoid(
        jnp.dot(wse2.astype(bf16), z.astype(bf16),
                preferred_element_type=f32) + bse2)                   # (C, B)

    # out = skip + SE-gated y   (skip read straight from x_ref)
    for b in range(B):
        o_ref[b] = x_ref[b] + y[:, b * T:(b + 1) * T] * g[:, b:b + 1]


def local_block(x, slab):
    return pl.pallas_call(
        local_block_kernel,
        out_shape=jax.ShapeDtypeStruct((B, C, T), jnp.float32),
        grid=(1,),                      # whole block is one lane-dense step
        in_specs=[pl.BlockSpec((B, C, T), lambda i: (0, 0, 0)),
                  pl.BlockSpec((SLAB_ROWS, LANES), lambda i: (0, 0))],
        out_specs=pl.BlockSpec((B, C, T), lambda i: (0, 0, 0)),
        compiler_params=pltpu.CompilerParams(
            dimension_semantics=("arbitrary",)),
    )(x, slab)


def make_params(key):
    ks = list(jax.random.split(key, 40))
    it = iter(ks)

    def nrm(shape, s=0.2):
        return (s * jax.random.normal(next(it), shape)).astype(jnp.float32)

    def bn_fold(n):
        gamma = 1.0 + 0.1 * jax.random.normal(next(it), (n,))
        beta = 0.1 * jax.random.normal(next(it), (n,))
        mean = 0.1 * jax.random.normal(next(it), (n,))
        var = 0.8 + 0.4 * jax.random.uniform(next(it), (n,))
        scale = (gamma / jnp.sqrt(var + EPS)).astype(jnp.float32)
        shift = (beta - mean * scale).astype(jnp.float32)
        return scale, shift

    w1 = nrm((C, C)); b1 = nrm((C,), 0.1); s1, t1 = bn_fold(C)

    wc_full = nrm((NUMS, WIDTH, WIDTH, K))       # (group, out, in, tap)
    bc = nrm((NUMS, WIDTH), 0.1)
    sc_l, tc_l = [], []
    for _ in range(NUMS):
        s_, t_ = bn_fold(WIDTH); sc_l.append(s_); tc_l.append(t_)
    sc = jnp.stack(sc_l); tc = jnp.stack(tc_l)   # (NUMS, WIDTH)

    w2 = nrm((C, C)); b2 = nrm((C,), 0.1); s3, t3 = bn_fold(C)
    wse1 = nrm((CB, C)); bse1 = nrm((CB,), 0.1)
    wse2 = nrm((C, CB)); bse2 = nrm((C,), 0.1)

    # fused res2 conv weights: wc_fused[i*W + o, k*W + c] == wc_full[i, o, c, k]
    wcf_np = np.asarray(wc_full)
    wc_fused = np.transpose(wcf_np, (0, 1, 3, 2)).reshape(NUMS * WIDTH, K * WIDTH)

    # per-channel bias / folded-BN table (one slab sub-block)
    vec = np.zeros((C, 16), np.float32)
    vec[:, 0] = np.asarray(b1); vec[:, 1] = np.asarray(s1); vec[:, 2] = np.asarray(t1)
    vec[:, 3] = np.asarray(b2); vec[:, 4] = np.asarray(s3); vec[:, 5] = np.asarray(t3)
    vec[:CB, 6] = np.asarray(bse1); vec[:, 7] = np.asarray(bse2)
    vec[:NUMS * WIDTH, 8] = np.asarray(bc).reshape(-1)
    vec[:NUMS * WIDTH, 9] = np.asarray(sc).reshape(-1)
    vec[:NUMS * WIDTH, 10] = np.asarray(tc).reshape(-1)

    # single lane-dense f32 parameter slab -> ONE parameter DMA
    slab = np.zeros((SLAB_ROWS, LANES), np.float32)
    slab[ROW_W1:ROW_W1 + C, :C] = np.asarray(w1)
    slab[ROW_WC:ROW_WC + NUMS * WIDTH, :K * WIDTH] = wc_fused
    slab[ROW_W2:ROW_W2 + C, :C] = np.asarray(w2)
    slab[ROW_WSE1:ROW_WSE1 + CB, :C] = np.asarray(wse1)
    slab[ROW_WSE2:ROW_WSE2 + C, :CB] = np.asarray(wse2)
    slab[ROW_VEC:ROW_VEC + C, :16] = vec

    ref_params = (w1, b1, s1, t1, wc_full, bc, sc, tc,
                  w2, b2, s3, t3, wse1, bse1, wse2, bse2)
    return jnp.asarray(slab), ref_params


def reference_forward(x, ref_params, quantize_matmul_inputs=True):
    """NumPy/f64 reference.  With quantize_matmul_inputs=True every matmul
    operand is rounded to bf16 first (the kernel's numerical contract:
    bf16 operands, f32 accumulation, f32 elementwise epilogues)."""
    f64 = lambda a: np.asarray(a, np.float64)
    (w1, b1, s1, t1, wcf, bc, sc, tc,
     w2, b2, s3, t3, wse1, bse1, wse2, bse2) = map(f64, ref_params)
    x = f64(x)
    if quantize_matmul_inputs:
        q = lambda a: np.asarray(
            jnp.asarray(a, jnp.float32).astype(jnp.bfloat16)).astype(np.float64)
    else:
        q = lambda a: a

    out = np.zeros_like(x)
    for n in range(x.shape[0]):
        xb = x[n]
        skip = xb
        h = q(w1) @ q(xb) + b1[:, None]
        h = np.maximum(h, 0.0) * s1[:, None] + t1[:, None]
        outs = []
        sp = None
        for i in range(NUMS):
            spx_i = h[i * WIDTH:(i + 1) * WIDTH]
            sp = spx_i if i == 0 else sp + spx_i
            sp_pad = np.pad(sp, ((0, 0), (PAD, PAD)))
            acc = np.zeros((WIDTH, T))
            for k in range(K):
                acc += q(wcf[i, :, :, k]) @ q(sp_pad[:, k * DIL:k * DIL + T])
            acc += bc[i][:, None]
            acc = np.maximum(acc, 0.0) * sc[i][:, None] + tc[i][:, None]
            sp = acc
            outs.append(acc)
        outs.append(h[NUMS * WIDTH:])
        y = np.concatenate(outs, 0)
        y = q(w2) @ q(y) + b2[:, None]
        y = np.maximum(y, 0.0) * s3[:, None] + t3[:, None]
        pooled = q(y).mean(axis=1, keepdims=True)
        z = np.maximum(q(wse1) @ q(pooled) + bse1[:, None], 0.0)
        g = 1.0 / (1.0 + np.exp(-(q(wse2) @ q(z) + bse2[:, None])))
        out[n] = skip + y * g
    return out


if __name__ == "__main__":
    key = jax.random.PRNGKey(0)
    kx, kp = jax.random.split(key)
    x = jax.random.normal(kx, (B, C, T), dtype=jnp.float32)
    slab, ref_params = make_params(kp)

    out = jax.block_until_ready(local_block(x, slab))
    assert out.shape == (B, C, T)
    out_np = np.asarray(out)

    # Tight check against the bf16-matmul-operand reference (kernel contract).
    ref_bf16 = reference_forward(np.asarray(x), ref_params,
                                 quantize_matmul_inputs=True)
    np.testing.assert_allclose(out_np, ref_bf16, rtol=5e-3, atol=5e-3)

    # Loose sanity check against the full-precision module reference
    # (bounds the bf16-operand drift).
    ref_full = reference_forward(np.asarray(x), ref_params,
                                 quantize_matmul_inputs=False)
    np.testing.assert_allclose(out_np, ref_full, rtol=1e-1, atol=1e-1)

    print("KERNEL_OK")
</pallas_src>

<mosaic_0001>
module attributes {stable_mosaic.version = 11 : i64} {
  func.func @local_block_kernel(%arg0: i32, %arg1: memref<2x32x128xf32, #tpu.memory_space<vmem>>, %arg2: memref<168x128xf32, #tpu.memory_space<vmem>>, %arg3: memref<2x32x128xf32, #tpu.memory_space<vmem>>) attributes {dimension_semantics = [#tpu.dimension_semantics<arbitrary>], iteration_bounds = array<i64: 1>, scalar_prefetch = 0 : i64, scratch_operands = 0 : i64, tpu.core_type = #tpu.core_type<tc>, window_params = [{pipeline_mode = #tpu.pipeline_mode<synchronous>, transform_indices = @transform_0, window_bounds = array<i64: 2, 32, 128>}, {pipeline_mode = #tpu.pipeline_mode<synchronous>, transform_indices = @transform_1, window_bounds = array<i64: 168, 128>}, {pipeline_mode = #tpu.pipeline_mode<synchronous>, transform_indices = @transform_2, window_bounds = array<i64: 2, 32, 128>}]} {
    %c0 = arith.constant 0 : index
    %c0_0 = arith.constant 0 : index
    %0 = vector.load %arg2[%c0, %c0_0] : memref<168x128xf32, #tpu.memory_space<vmem>>, vector<32x32xf32>
    %c56 = arith.constant 56 : index
    %c0_1 = arith.constant 0 : index
    %1 = vector.load %arg2[%c56, %c0_1] : memref<168x128xf32, #tpu.memory_space<vmem>>, vector<32x32xf32>
    %c88 = arith.constant 88 : index
    %c0_2 = arith.constant 0 : index
    %2 = vector.load %arg2[%c88, %c0_2] : memref<168x128xf32, #tpu.memory_space<vmem>>, vector<16x32xf32>
    %c104 = arith.constant 104 : index
    %c0_3 = arith.constant 0 : index
    %3 = vector.load %arg2[%c104, %c0_3] : memref<168x128xf32, #tpu.memory_space<vmem>>, vector<32x16xf32>
    %c136 = arith.constant 136 : index
    %c0_4 = arith.constant 0 : index
    %4 = vector.load %arg2[%c136, %c0_4] : memref<168x128xf32, #tpu.memory_space<vmem>>, vector<32x16xf32>
    %5 = vector.extract_strided_slice %4 {offsets = [0, 0], sizes = [32, 1], strides = [1, 1]} : vector<32x16xf32> to vector<32x1xf32>
    %6 = vector.extract_strided_slice %4 {offsets = [0, 1], sizes = [32, 1], strides = [1, 1]} : vector<32x16xf32> to vector<32x1xf32>
    %7 = vector.extract_strided_slice %4 {offsets = [0, 2], sizes = [32, 1], strides = [1, 1]} : vector<32x16xf32> to vector<32x1xf32>
    %8 = vector.extract_strided_slice %4 {offsets = [0, 3], sizes = [32, 1], strides = [1, 1]} : vector<32x16xf32> to vector<32x1xf32>
    %9 = vector.extract_strided_slice %4 {offsets = [0, 4], sizes = [32, 1], strides = [1, 1]} : vector<32x16xf32> to vector<32x1xf32>
    %10 = vector.extract_strided_slice %4 {offsets = [0, 5], sizes = [32, 1], strides = [1, 1]} : vector<32x16xf32> to vector<32x1xf32>
    %11 = vector.extract_strided_slice %4 {offsets = [0, 6], sizes = [16, 1], strides = [1, 1]} : vector<32x16xf32> to vector<16x1xf32>
    %12 = vector.extract_strided_slice %4 {offsets = [0, 7], sizes = [32, 1], strides = [1, 1]} : vector<32x16xf32> to vector<32x1xf32>
    %13 = vector.extract_strided_slice %4 {offsets = [0, 8], sizes = [32, 1], strides = [1, 1]} : vector<32x16xf32> to vector<32x1xf32>
    %14 = vector.extract_strided_slice %4 {offsets = [0, 9], sizes = [32, 1], strides = [1, 1]} : vector<32x16xf32> to vector<32x1xf32>
    %15 = vector.extract_strided_slice %4 {offsets = [0, 10], sizes = [32, 1], strides = [1, 1]} : vector<32x16xf32> to vector<32x1xf32>
    %c0_5 = arith.constant 0 : index
    %c0_6 = arith.constant 0 : index
    %c0_7 = arith.constant 0 : index
    %16 = vector.load %arg1[%c0_5, %c0_6, %c0_7] : memref<2x32x128xf32, #tpu.memory_space<vmem>>, vector<1x32x128xf32>
    %17 = vector.shape_cast %16 : vector<1x32x128xf32> to vector<32x128xf32>
    %c1 = arith.constant 1 : index
    %c0_8 = arith.constant 0 : index
    %c0_9 = arith.constant 0 : index
    %18 = vector.load %arg1[%c1, %c0_8, %c0_9] : memref<2x32x128xf32, #tpu.memory_space<vmem>>, vector<1x32x128xf32>
    %19 = vector.shape_cast %18 : vector<1x32x128xf32> to vector<32x128xf32>
    %20 = tpu.concatenate %17, %19 in 1 : vector<32x128xf32>, vector<32x128xf32> -> vector<32x256xf32>
    %21 = arith.truncf %0 : vector<32x32xf32> to vector<32x32xbf16>
    %22 = arith.truncf %20 : vector<32x256xf32> to vector<32x256xbf16>
    %cst = arith.constant dense<0.000000e+00> : vector<32x256xf32>
    %23 = tpu.matmul %21, %22, %cst {dimension_numbers = #tpu.dot_dimension_numbers<[1], [0], [0], [1], [0, 0, 1, 1], [], []>} : vector<32x32xbf16>, vector<32x256xbf16>, vector<32x256xf32> -> vector<32x256xf32>
    %24 = vector.broadcast %5 : vector<32x1xf32> to vector<32x256xf32>
    %25 = arith.addf %23, %24 : vector<32x256xf32>
    %cst_10 = arith.constant 0.000000e+00 : f32
    %26 = vector.broadcast %cst_10 : f32 to vector<32x256xf32>
    %27 = arith.maximumf %25, %26 : vector<32x256xf32>
    %28 = vector.broadcast %6 : vector<32x1xf32> to vector<32x256xf32>
    %29 = arith.mulf %27, %28 : vector<32x256xf32>
    %30 = vector.broadcast %7 : vector<32x1xf32> to vector<32x256xf32>
    %31 = arith.addf %29, %30 : vector<32x256xf32>
    %32 = tpu.iota {dimensions = array<i32: 1>} : vector<1x256xi32>
    %c127_i32 = arith.constant 127 : i32
    %33 = vector.broadcast %c127_i32 : i32 to vector<1x256xi32>
    %34 = arith.andi %32, %33 : vector<1x256xi32>
    %c-1_i32 = arith.constant -1 : i32
    %35 = vector.broadcast %c-1_i32 : i32 to vector<1x256xi32>
    %36 = arith.addi %34, %35 : vector<1x256xi32>
    %c0_i32 = arith.constant 0 : i32
    %37 = vector.broadcast %c0_i32 : i32 to vector<1x256xi32>
    %38 = arith.cmpi sge, %36, %37 : vector<1x256xi32>
    %c-1_i32_11 = arith.constant -1 : i32
    %39 = vector.broadcast %c-1_i32_11 : i32 to vector<1x256xi32>
    %40 = arith.addi %34, %39 : vector<1x256xi32>
    %c128_i32 = arith.constant 128 : i32
    %41 = vector.broadcast %c128_i32 : i32 to vector<1x256xi32>
    %42 = arith.cmpi slt, %40, %41 : vector<1x256xi32>
    %43 = arith.andi %38, %42 : vector<1x256xi1>
    %44 = arith.extui %43 : vector<1x256xi1> to vector<1x256xi32>
    %45 = arith.sitofp %44 : vector<1x256xi32> to vector<1x256xf32>
    %c1_i32 = arith.constant 1 : i32
    %46 = vector.broadcast %c1_i32 : i32 to vector<1x256xi32>
    %47 = arith.addi %34, %46 : vector<1x256xi32>
    %c0_i32_12 = arith.constant 0 : i32
    %48 = vector.broadcast %c0_i32_12 : i32 to vector<1x256xi32>
    %49 = arith.cmpi sge, %47, %48 : vector<1x256xi32>
    %c1_i32_13 = arith.constant 1 : i32
    %50 = vector.broadcast %c1_i32_13 : i32 to vector<1x256xi32>
    %51 = arith.addi %34, %50 : vector<1x256xi32>
    %c128_i32_14 = arith.constant 128 : i32
    %52 = vector.broadcast %c128_i32_14 : i32 to vector<1x256xi32>
    %53 = arith.cmpi slt, %51, %52 : vector<1x256xi32>
    %54 = arith.andi %49, %53 : vector<1x256xi1>
    %55 = arith.extui %54 : vector<1x256xi1> to vector<1x256xi32>
    %56 = arith.sitofp %55 : vector<1x256xi32> to vector<1x256xf32>
    %57 = vector.extract_strided_slice %31 {offsets = [0, 0], sizes = [8, 256], strides = [1, 1]} : vector<32x256xf32> to vector<8x256xf32>
    %58 = vector.extract_strided_slice %57 {offsets = [0, 255], sizes = [8, 1], strides = [1, 1]} : vector<8x256xf32> to vector<8x1xf32>
    %59 = vector.extract_strided_slice %57 {offsets = [0, 0], sizes = [8, 255], strides = [1, 1]} : vector<8x256xf32> to vector<8x255xf32>
    %60 = tpu.concatenate %58, %59 in 1 : vector<8x1xf32>, vector<8x255xf32> -> vector<8x256xf32>
    %61 = vector.broadcast %45 : vector<1x256xf32> to vector<8x256xf32>
    %62 = arith.mulf %60, %61 : vector<8x256xf32>
    %63 = vector.extract_strided_slice %57 {offsets = [0, 1], sizes = [8, 255], strides = [1, 1]} : vector<8x256xf32> to vector<8x255xf32>
    %64 = vector.extract_strided_slice %57 {offsets = [0, 0], sizes = [8, 1], strides = [1, 1]} : vector<8x256xf32> to vector<8x1xf32>
    %65 = tpu.concatenate %63, %64 in 1 : vector<8x255xf32>, vector<8x1xf32> -> vector<8x256xf32>
    %66 = vector.broadcast %56 : vector<1x256xf32> to vector<8x256xf32>
    %67 = arith.mulf %65, %66 : vector<8x256xf32>
    %68 = tpu.concatenate %62, %57, %67 in 0 : vector<8x256xf32>, vector<8x256xf32>, vector<8x256xf32> -> vector<24x256xf32>
    %c32 = arith.constant 32 : index
    %c0_15 = arith.constant 0 : index
    %69 = vector.load %arg2[%c32, %c0_15] : memref<168x128xf32, #tpu.memory_space<vmem>>, vector<8x24xf32>
    %70 = arith.truncf %69 : vector<8x24xf32> to vector<8x24xbf16>
    %71 = arith.truncf %68 : vector<24x256xf32> to vector<24x256xbf16>
    %cst_16 = arith.constant dense<0.000000e+00> : vector<8x256xf32>
    %72 = tpu.matmul %70, %71, %cst_16 {dimension_numbers = #tpu.dot_dimension_numbers<[1], [0], [0], [1], [0, 0, 1, 1], [], []>} : vector<8x24xbf16>, vector<24x256xbf16>, vector<8x256xf32> -> vector<8x256xf32>
    %73 = vector.extract_strided_slice %13 {offsets = [0, 0], sizes = [8, 1], strides = [1, 1]} : vector<32x1xf32> to vector<8x1xf32>
    %74 = vector.broadcast %73 : vector<8x1xf32> to vector<8x256xf32>
    %75 = arith.addf %72, %74 : vector<8x256xf32>
    %cst_17 = arith.constant 0.000000e+00 : f32
    %76 = vector.broadcast %cst_17 : f32 to vector<8x256xf32>
    %77 = arith.maximumf %75, %76 : vector<8x256xf32>
    %78 = vector.extract_strided_slice %14 {offsets = [0, 0], sizes = [8, 1], strides = [1, 1]} : vector<32x1xf32> to vector<8x1xf32>
    %79 = vector.broadcast %78 : vector<8x1xf32> to vector<8x256xf32>
    %80 = arith.mulf %77, %79 : vector<8x256xf32>
    %81 = vector.extract_strided_slice %15 {offsets = [0, 0], sizes = [8, 1], strides = [1, 1]} : vector<32x1xf32> to vector<8x1xf32>
    %82 = vector.broadcast %81 : vector<8x1xf32> to vector<8x256xf32>
    %83 = arith.addf %80, %82 : vector<8x256xf32>
    %84 = vector.extract_strided_slice %31 {offsets = [8, 0], sizes = [8, 256], strides = [1, 1]} : vector<32x256xf32> to vector<8x256xf32>
    %85 = arith.addf %83, %84 : vector<8x256xf32>
    %86 = vector.extract_strided_slice %85 {offsets = [0, 255], sizes = [8, 1], strides = [1, 1]} : vector<8x256xf32> to vector<8x1xf32>
    %87 = vector.extract_strided_slice %85 {offsets = [0, 0], sizes = [8, 255], strides = [1, 1]} : vector<8x256xf32> to vector<8x255xf32>
    %88 = tpu.concatenate %86, %87 in 1 : vector<8x1xf32>, vector<8x255xf32> -> vector<8x256xf32>
    %89 = vector.broadcast %45 : vector<1x256xf32> to vector<8x256xf32>
    %90 = arith.mulf %88, %89 : vector<8x256xf32>
    %91 = vector.extract_strided_slice %85 {offsets = [0, 1], sizes = [8, 255], strides = [1, 1]} : vector<8x256xf32> to vector<8x255xf32>
    %92 = vector.extract_strided_slice %85 {offsets = [0, 0], sizes = [8, 1], strides = [1, 1]} : vector<8x256xf32> to vector<8x1xf32>
    %93 = tpu.concatenate %91, %92 in 1 : vector<8x255xf32>, vector<8x1xf32> -> vector<8x256xf32>
    %94 = vector.broadcast %56 : vector<1x256xf32> to vector<8x256xf32>
    %95 = arith.mulf %93, %94 : vector<8x256xf32>
    %96 = tpu.concatenate %90, %85, %95 in 0 : vector<8x256xf32>, vector<8x256xf32>, vector<8x256xf32> -> vector<24x256xf32>
    %c40 = arith.constant 40 : index
    %c0_18 = arith.constant 0 : index
    %97 = vector.load %arg2[%c40, %c0_18] : memref<168x128xf32, #tpu.memory_space<vmem>>, vector<8x24xf32>
    %98 = arith.truncf %97 : vector<8x24xf32> to vector<8x24xbf16>
    %99 = arith.truncf %96 : vector<24x256xf32> to vector<24x256xbf16>
    %cst_19 = arith.constant dense<0.000000e+00> : vector<8x256xf32>
    %100 = tpu.matmul %98, %99, %cst_19 {dimension_numbers = #tpu.dot_dimension_numbers<[1], [0], [0], [1], [0, 0, 1, 1], [], []>} : vector<8x24xbf16>, vector<24x256xbf16>, vector<8x256xf32> -> vector<8x256xf32>
    %101 = vector.extract_strided_slice %13 {offsets = [8, 0], sizes = [8, 1], strides = [1, 1]} : vector<32x1xf32> to vector<8x1xf32>
    %102 = vector.broadcast %101 : vector<8x1xf32> to vector<8x256xf32>
    %103 = arith.addf %100, %102 : vector<8x256xf32>
    %cst_20 = arith.constant 0.000000e+00 : f32
    %104 = vector.broadcast %cst_20 : f32 to vector<8x256xf32>
    %105 = arith.maximumf %103, %104 : vector<8x256xf32>
    %106 = vector.extract_strided_slice %14 {offsets = [8, 0], sizes = [8, 1], strides = [1, 1]} : vector<32x1xf32> to vector<8x1xf32>
    %107 = vector.broadcast %106 : vector<8x1xf32> to vector<8x256xf32>
    %108 = arith.mulf %105, %107 : vector<8x256xf32>
    %109 = vector.extract_strided_slice %15 {offsets = [8, 0], sizes = [8, 1], strides = [1, 1]} : vector<32x1xf32> to vector<8x1xf32>
    %110 = vector.broadcast %109 : vector<8x1xf32> to vector<8x256xf32>
    %111 = arith.addf %108, %110 : vector<8x256xf32>
    %112 = vector.extract_strided_slice %31 {offsets = [16, 0], sizes = [8, 256], strides = [1, 1]} : vector<32x256xf32> to vector<8x256xf32>
    %113 = arith.addf %111, %112 : vector<8x256xf32>
    %114 = vector.extract_strided_slice %113 {offsets = [0, 255], sizes = [8, 1], strides = [1, 1]} : vector<8x256xf32> to vector<8x1xf32>
    %115 = vector.extract_strided_slice %113 {offsets = [0, 0], sizes = [8, 255], strides = [1, 1]} : vector<8x256xf32> to vector<8x255xf32>
    %116 = tpu.concatenate %114, %115 in 1 : vector<8x1xf32>, vector<8x255xf32> -> vector<8x256xf32>
    %117 = vector.broadcast %45 : vector<1x256xf32> to vector<8x256xf32>
    %118 = arith.mulf %116, %117 : vector<8x256xf32>
    %119 = vector.extract_strided_slice %113 {offsets = [0, 1], sizes = [8, 255], strides = [1, 1]} : vector<8x256xf32> to vector<8x255xf32>
    %120 = vector.extract_strided_slice %113 {offsets = [0, 0], sizes = [8, 1], strides = [1, 1]} : vector<8x256xf32> to vector<8x1xf32>
    %121 = tpu.concatenate %119, %120 in 1 : vector<8x255xf32>, vector<8x1xf32> -> vector<8x256xf32>
    %122 = vector.broadcast %56 : vector<1x256xf32> to vector<8x256xf32>
    %123 = arith.mulf %121, %122 : vector<8x256xf32>
    %124 = tpu.concatenate %118, %113, %123 in 0 : vector<8x256xf32>, vector<8x256xf32>, vector<8x256xf32> -> vector<24x256xf32>
    %c48 = arith.constant 48 : index
    %c0_21 = arith.constant 0 : index
    %125 = vector.load %arg2[%c48, %c0_21] : memref<168x128xf32, #tpu.memory_space<vmem>>, vector<8x24xf32>
    %126 = arith.truncf %125 : vector<8x24xf32> to vector<8x24xbf16>
    %127 = arith.truncf %124 : vector<24x256xf32> to vector<24x256xbf16>
    %cst_22 = arith.constant dense<0.000000e+00> : vector<8x256xf32>
    %128 = tpu.matmul %126, %127, %cst_22 {dimension_numbers = #tpu.dot_dimension_numbers<[1], [0], [0], [1], [0, 0, 1, 1], [], []>} : vector<8x24xbf16>, vector<24x256xbf16>, vector<8x256xf32> -> vector<8x256xf32>
    %129 = vector.extract_strided_slice %13 {offsets = [16, 0], sizes = [8, 1], strides = [1, 1]} : vector<32x1xf32> to vector<8x1xf32>
    %130 = vector.broadcast %129 : vector<8x1xf32> to vector<8x256xf32>
    %131 = arith.addf %128, %130 : vector<8x256xf32>
    %cst_23 = arith.constant 0.000000e+00 : f32
    %132 = vector.broadcast %cst_23 : f32 to vector<8x256xf32>
    %133 = arith.maximumf %131, %132 : vector<8x256xf32>
    %134 = vector.extract_strided_slice %14 {offsets = [16, 0], sizes = [8, 1], strides = [1, 1]} : vector<32x1xf32> to vector<8x1xf32>
    %135 = vector.broadcast %134 : vector<8x1xf32> to vector<8x256xf32>
    %136 = arith.mulf %133, %135 : vector<8x256xf32>
    %137 = vector.extract_strided_slice %15 {offsets = [16, 0], sizes = [8, 1], strides = [1, 1]} : vector<32x1xf32> to vector<8x1xf32>
    %138 = vector.broadcast %137 : vector<8x1xf32> to vector<8x256xf32>
    %139 = arith.addf %136, %138 : vector<8x256xf32>
    %140 = vector.extract_strided_slice %31 {offsets = [24, 0], sizes = [8, 256], strides = [1, 1]} : vector<32x256xf32> to vector<8x256xf32>
    %141 = tpu.concatenate %83, %111, %139, %140 in 0 : vector<8x256xf32>, vector<8x256xf32>, vector<8x256xf32>, vector<8x256xf32> -> vector<32x256xf32>
    %142 = arith.truncf %1 : vector<32x32xf32> to vector<32x32xbf16>
    %143 = arith.truncf %141 : vector<32x256xf32> to vector<32x256xbf16>
    %cst_24 = arith.constant dense<0.000000e+00> : vector<32x256xf32>
    %144 = tpu.matmul %142, %143, %cst_24 {dimension_numbers = #tpu.dot_dimension_numbers<[1], [0], [0], [1], [0, 0, 1, 1], [], []>} : vector<32x32xbf16>, vector<32x256xbf16>, vector<32x256xf32> -> vector<32x256xf32>
    %145 = vector.broadcast %8 : vector<32x1xf32> to vector<32x256xf32>
    %146 = arith.addf %144, %145 : vector<32x256xf32>
    %cst_25 = arith.constant 0.000000e+00 : f32
    %147 = vector.broadcast %cst_25 : f32 to vector<32x256xf32>
    %148 = arith.maximumf %146, %147 : vector<32x256xf32>
    %149 = vector.broadcast %9 : vector<32x1xf32> to vector<32x256xf32>
    %150 = arith.mulf %148, %149 : vector<32x256xf32>
    %151 = vector.broadcast %10 : vector<32x1xf32> to vector<32x256xf32>
    %152 = arith.addf %150, %151 : vector<32x256xf32>
    %153 = tpu.iota {dimensions = array<i32: 0>} : vector<256x2xi32>
    %154 = tpu.iota {dimensions = array<i32: 1>} : vector<256x2xi32>
    %c128_i32_26 = arith.constant 128 : i32
    %155 = vector.broadcast %c128_i32_26 : i32 to vector<256x2xi32>
    %156 = arith.muli %154, %155 : vector<256x2xi32>
    %157 = arith.subi %153, %156 : vector<256x2xi32>
    %c0_i32_27 = arith.constant 0 : i32
    %158 = vector.broadcast %c0_i32_27 : i32 to vector<256x2xi32>
    %159 = arith.cmpi sge, %157, %158 : vector<256x2xi32>
    %c128_i32_28 = arith.constant 128 : i32
    %160 = vector.broadcast %c128_i32_28 : i32 to vector<256x2xi32>
    %161 = arith.cmpi slt, %157, %160 : vector<256x2xi32>
    %162 = arith.andi %159, %161 : vector<256x2xi1>
    %cst_29 = arith.constant 7.812500e-03 : f32
    %cst_30 = arith.constant 0.000000e+00 : f32
    %163 = vector.broadcast %cst_29 : f32 to vector<256x2xf32>
    %164 = vector.broadcast %cst_30 : f32 to vector<256x2xf32>
    %165 = arith.select %162, %163, %164 : vector<256x2xi1>, vector<256x2xf32>
    %166 = arith.truncf %152 : vector<32x256xf32> to vector<32x256xbf16>
    %167 = arith.truncf %165 : vector<256x2xf32> to vector<256x2xbf16>
    %cst_31 = arith.constant dense<0.000000e+00> : vector<32x2xf32>
    %168 = tpu.matmul %166, %167, %cst_31 {dimension_numbers = #tpu.dot_dimension_numbers<[1], [0], [0], [1], [0, 0, 1, 1], [], []>} : vector<32x256xbf16>, vector<256x2xbf16>, vector<32x2xf32> -> vector<32x2xf32>
    %169 = arith.truncf %2 : vector<16x32xf32> to vector<16x32xbf16>
    %170 = arith.truncf %168 : vector<32x2xf32> to vector<32x2xbf16>
    %cst_32 = arith.constant dense<0.000000e+00> : vector<16x2xf32>
    %171 = tpu.matmul %169, %170, %cst_32 {dimension_numbers = #tpu.dot_dimension_numbers<[1], [0], [0], [1], [0, 0, 1, 1], [], []>} : vector<16x32xbf16>, vector<32x2xbf16>, vector<16x2xf32> -> vector<16x2xf32>
    %172 = vector.broadcast %11 : vector<16x1xf32> to vector<16x2xf32>
    %173 = arith.addf %171, %172 : vector<16x2xf32>
    %cst_33 = arith.constant 0.000000e+00 : f32
    %174 = vector.broadcast %cst_33 : f32 to vector<16x2xf32>
    %175 = arith.maximumf %173, %174 : vector<16x2xf32>
    %176 = arith.truncf %3 : vector<32x16xf32> to vector<32x16xbf16>
    %177 = arith.truncf %175 : vector<16x2xf32> to vector<16x2xbf16>
    %cst_34 = arith.constant dense<0.000000e+00> : vector<32x2xf32>
    %178 = tpu.matmul %176, %177, %cst_34 {dimension_numbers = #tpu.dot_dimension_numbers<[1], [0], [0], [1], [0, 0, 1, 1], [], []>} : vector<32x16xbf16>, vector<16x2xbf16>, vector<32x2xf32> -> vector<32x2xf32>
    %179 = vector.broadcast %12 : vector<32x1xf32> to vector<32x2xf32>
    %180 = arith.addf %178, %179 : vector<32x2xf32>
    %181 = arith.negf %180 : vector<32x2xf32>
    %182 = math.exp %181 : vector<32x2xf32>
    %cst_35 = arith.constant 1.000000e+00 : f32
    %183 = vector.broadcast %cst_35 : f32 to vector<32x2xf32>
    %184 = arith.addf %183, %182 : vector<32x2xf32>
    %185 = arith.divf %183, %184 : vector<32x2xf32>
    %c0_36 = arith.constant 0 : index
    %c0_37 = arith.constant 0 : index
    %c0_38 = arith.constant 0 : index
    %186 = vector.load %arg1[%c0_36, %c0_37, %c0_38] : memref<2x32x128xf32, #tpu.memory_space<vmem>>, vector<1x32x128xf32>
    %187 = vector.shape_cast %186 : vector<1x32x128xf32> to vector<32x128xf32>
    %188 = vector.extract_strided_slice %152 {offsets = [0, 0], sizes = [32, 128], strides = [1, 1]} : vector<32x256xf32> to vector<32x128xf32>
    %189 = vector.extract_strided_slice %185 {offsets = [0, 0], sizes = [32, 1], strides = [1, 1]} : vector<32x2xf32> to vector<32x1xf32>
    %190 = vector.broadcast %189 : vector<32x1xf32> to vector<32x128xf32>
    %191 = arith.mulf %188, %190 : vector<32x128xf32>
    %192 = arith.addf %187, %191 : vector<32x128xf32>
    %c0_39 = arith.constant 0 : index
    %c0_40 = arith.constant 0 : index
    %c0_41 = arith.constant 0 : index
    %193 = vector.load %arg3[%c0_39, %c0_40, %c0_41] : memref<2x32x128xf32, #tpu.memory_space<vmem>>, vector<1x32x128xf32>
    %194 = vector.shape_cast %193 : vector<1x32x128xf32> to vector<32x128xf32>
    %195 = vector.shape_cast %192 : vector<32x128xf32> to vector<1x32x128xf32>
    tpu.vector_store %arg3[%c0_39, %c0_40, %c0_41], %195 {strides = array<i32>} : memref<2x32x128xf32, #tpu.memory_space<vmem>>, vector<1x32x128xf32>,
    %c1_42 = arith.constant 1 : index
    %c0_43 = arith.constant 0 : index
    %c0_44 = arith.constant 0 : index
    %196 = vector.load %arg1[%c1_42, %c0_43, %c0_44] : memref<2x32x128xf32, #tpu.memory_space<vmem>>, vector<1x32x128xf32>
    %197 = vector.shape_cast %196 : vector<1x32x128xf32> to vector<32x128xf32>
    %198 = vector.extract_strided_slice %152 {offsets = [0, 128], sizes = [32, 128], strides = [1, 1]} : vector<32x256xf32> to vector<32x128xf32>
    %199 = vector.extract_strided_slice %185 {offsets = [0, 1], sizes = [32, 1], strides = [1, 1]} : vector<32x2xf32> to vector<32x1xf32>
    %200 = vector.broadcast %199 : vector<32x1xf32> to vector<32x128xf32>
    %201 = arith.mulf %198, %200 : vector<32x128xf32>
    %202 = arith.addf %197, %201 : vector<32x128xf32>
    %c1_45 = arith.constant 1 : index
    %c0_46 = arith.constant 0 : index
    %c0_47 = arith.constant 0 : index
    %203 = vector.load %arg3[%c1_45, %c0_46, %c0_47] : memref<2x32x128xf32, #tpu.memory_space<vmem>>, vector<1x32x128xf32>
    %204 = vector.shape_cast %203 : vector<1x32x128xf32> to vector<32x128xf32>
    %205 = vector.shape_cast %202 : vector<32x128xf32> to vector<1x32x128xf32>
    tpu.vector_store %arg3[%c1_45, %c0_46, %c0_47], %205 {strides = array<i32>} : memref<2x32x128xf32, #tpu.memory_space<vmem>>, vector<1x32x128xf32>,
    return
  }
  func.func @transform_0(%arg0: i32) -> (i32, i32, i32) {
    %c0_i32 = arith.constant 0 : i32
    %c0_i32_0 = arith.constant 0 : i32
    %c0_i32_1 = arith.constant 0 : i32
    %c0_i32_2 = arith.constant 0 : i32
    return %c0_i32, %c0_i32_0, %c0_i32_1 : i32, i32, i32
  }
  func.func @transform_1(%arg0: i32) -> (i32, i32) {
    %c0_i32 = arith.constant 0 : i32
    %c0_i32_0 = arith.constant 0 : i32
    %c0_i32_1 = arith.constant 0 : i32
    return %c0_i32, %c0_i32_0 : i32, i32
  }
  func.func @transform_2(%arg0: i32) -> (i32, i32, i32) {
    %c0_i32 = arith.constant 0 : i32
    %c0_i32_0 = arith.constant 0 : i32
    %c0_i32_1 = arith.constant 0 : i32
    %c0_i32_2 = arith.constant 0 : i32
    return %c0_i32, %c0_i32_0, %c0_i32_1 : i32, i32, i32
  }
}

</mosaic_0001>

<llo_original>
// kernel: tpu_custom_call.1
$region0: #{tpu_custom_call.1}
  #allocation0 [shape = 'u32[]', space=smem, size = 0x4, offset = 0x4, fixed_abs, tag = 'smem constant byte address 0x4 - core index']
  #allocation1 [shape = 'u32[144,128]{1,0:T(1,128)}', space=vmem, size = 0x12000, scoped, tag = 'internal scratch']
  %s0 = inlined_call_operand.hbm [shape: f32[2,32,128], index: 0, kind: input, shape index: {}]
  %s1 = inlined_call_operand.hbm [shape: f32[168,128], index: 1, kind: input, shape index: {}]
  %s2 = inlined_call_operand.hbm [shape: f32[2,32,128], index: 2, kind: output, shape index: {}]
  %s3 = sld [smem:[#allocation0]]
  $region26: #{tpu_custom_call.1} parent=0
    _
  %s5 = ssub.s32 1, %s3
  %s6 = scalar_select 0, %s5, %s3
  $region1: #{tpu_custom_call.1} parent=0
    #allocation2 [shape = 'u8[32768]{0}', space=vmem, size = 0x8000, scoped, tag = 'input window, operand 0, single buffered']
    #allocation3 [shape = 's32[1]{0}', space=sflag, size = 0x4, scoped, tag = 'scoped memory for tpu_custom_call.1']
    #allocation4 [shape = 's32[1]{0}', space=sflag, size = 0x4, scoped, tag = 'scoped memory for tpu_custom_call.1']
    #allocation5 [shape = 'u8[86016]{0}', space=vmem, size = 0x15000, scoped, tag = 'input window, operand 1, single buffered']
    #allocation6 [shape = 's32[1]{0}', space=sflag, size = 0x4, scoped, tag = 'scoped memory for tpu_custom_call.1']
    #allocation7 [shape = 'u8[32768]{0}', space=vmem, size = 0x8000, scoped, tag = 'output window, operand 0, single buffered']
    %7 = vsyncpa [#allocation3], 0
    %8 = vsyncpa [#allocation6], 0
    %9 = vsyncpa [#allocation4], 0
    // Predicated region
    $region2: #{tpu_custom_call.1} parent=1 // pred_check
      _
    $region3: #{tpu_custom_call.1} parent=1 // pred_check_branch
      %11 = sbr.rel (0) target = $region5
    $region4: #{tpu_custom_call.1} parent=1 // pred_region
      %s13 = ssub.s32 1024, 1024
      %14 = vsyncadd [#allocation3], %s13
      %s15 = sshll.u32 [#allocation2], 4
      %s16 = int_to_ptr.vmem [resolvable:$true] %s15
      %21 = dma.hbm_to_vmem [thread:$0]  %s0, 1024, %s16, [#allocation3], 128, 128, 8
    $region5: #{tpu_custom_call.1} parent=1 // pred_fallthru
      _
    // Predicated region
    $region6: #{tpu_custom_call.1} parent=1 // pred_check
      _
    $region7: #{tpu_custom_call.1} parent=1 // pred_check_branch
      %23 = sbr.rel (0) target = $region9
    $region8: #{tpu_custom_call.1} parent=1 // pred_region
      %s25 = ssub.s32 2688, 2688
      %26 = vsyncadd [#allocation6], %s25
      %s27 = sshll.u32 [#allocation5], 4
      %s28 = int_to_ptr.vmem [resolvable:$true] %s27
      %33 = dma.hbm_to_vmem [thread:$0]  %s1, 2688, %s28, [#allocation6], 128, 128, 8
    $region9: #{tpu_custom_call.1} parent=1 // pred_fallthru
      _
    // Predicated region
    $region10: #{tpu_custom_call.1} parent=1 // pred_check
      _
    $region11: #{tpu_custom_call.1} parent=1 // pred_check_branch
      %35 = sbr.rel (0) target = $region13
    $region12: #{tpu_custom_call.1} parent=1 // pred_region
      %36 = dma.done [#allocation3], 1024
    $region13: #{tpu_custom_call.1} parent=1 // pred_fallthru
      _
    // Predicated region
    $region14: #{tpu_custom_call.1} parent=1 // pred_check
      _
    $region15: #{tpu_custom_call.1} parent=1 // pred_check_branch
      %38 = sbr.rel (0) target = $region17
    $region16: #{tpu_custom_call.1} parent=1 // pred_region
      %39 = dma.done [#allocation6], 2688
    $region17: #{tpu_custom_call.1} parent=1 // pred_fallthru
      _
    %v41 = vld [vmem:[#allocation5] sm:$0xff]
    %v42 = vld [vmem:[#allocation5 + $0x8] sm:$0xff]
    %v43 = vld [vmem:[#allocation5 + $0x10] sm:$0xff]
    %v44 = vld [vmem:[#allocation5 + $0x18] sm:$0xff]
    %v45 = vld [vmem:[#allocation5 + $0x38] sm:$0xff]
    %v46 = vld [vmem:[#allocation5 + $0x40] sm:$0xff]
    %v47 = vld [vmem:[#allocation5 + $0x48] sm:$0xff]
    %v48 = vld [vmem:[#allocation5 + $0x50] sm:$0xff]
    %v49 = vld [vmem:[#allocation5 + $0x58] sm:$0xff]
    %v50 = vld [vmem:[#allocation5 + $0x60] sm:$0xff]
    %v51 = vld [vmem:[#allocation5 + $0x68] sm:$0xff]
    %v52 = vld [vmem:[#allocation5 + $0x70] sm:$0xff]
    %v53 = vld [vmem:[#allocation5 + $0x78] sm:$0xff]
    %v54 = vld [vmem:[#allocation5 + $0x80] sm:$0xff]
    %v55 = vld [vmem:[#allocation5 + $0x88] sm:$0xff]
    %v56 = vld [vmem:[#allocation5 + $0x90] sm:$0xff]
    %v57 = vld [vmem:[#allocation5 + $0x98] sm:$0xff]
    %v58 = vld [vmem:[#allocation5 + $0xa0] sm:$0xff]
    %v59 = vld [vmem:[#allocation2] sm:$0xff]
    %v60 = vld [vmem:[#allocation2 + $0x8] sm:$0xff]
    %v61 = vld [vmem:[#allocation2 + $0x10] sm:$0xff]
    %v62 = vld [vmem:[#allocation2 + $0x18] sm:$0xff]
    %s63 = scalar_lea.vmem [#allocation2], 32
    %v64 = vld [vmem:[%s63] sm:$0xff]
    %v65 = vld [vmem:[%s63 + $0x8] sm:$0xff]
    %v66 = vld [vmem:[%s63 + $0x10] sm:$0xff]
    %v67 = vld [vmem:[%s63 + $0x18] sm:$0xff]
    %v68 = vpack.c.bf16 %v42, %v41
    %v69 = vpack.c.bf16 %v44, %v43
    %v70 = vpack.c.bf16 %v60, %v59
    %v71 = vpack.c.bf16 %v65, %v64
    %v72 = vpack.c.bf16 %v62, %v61
    %v73 = vpack.c.bf16 %v67, %v66
    %75 = vset.pattern.permute.xlu0 0
    %76 = vperm.xlu0 %75, %v55
    %v77 = vpop.permute.xlu0 %76
    %80 = vset.pattern.permute.xlu0 0
    %81 = vperm.xlu0 %80, %v56
    %v82 = vpop.permute.xlu0 %81
    %85 = vset.pattern.permute.xlu0 0
    %86 = vperm.xlu0 %85, %v57
    %v87 = vpop.permute.xlu0 %86
    %90 = vset.pattern.permute.xlu0 0
    %91 = vperm.xlu0 %90, %v58
    %v92 = vpop.permute.xlu0 %91
    %vm94 = vcmask 261120
    %v96 = vsel %vm94, %v68, 0
    %v99 = vsel %vm94, %v69, 0
    %101 = vmatprep.subr.bf16.mxu0 0
    %102 = vmatpush1.bf16.msra.mxu0 0
    %103 = vmatprep.subr.bf16.mxu0 0
    %104 = vmatpush1.bf16.msra.mxu0 0
    %105 = vmatprep.subr.bf16.mxu0 0
    %106 = vmatpush1.bf16.msra.mxu0 0
    %107 = vmatprep.subr.bf16.mxu0 0
    %108 = vmatpush1.bf16.msra.mxu0 0
    %109 = vmatprep.subr.bf16.mxu0 0
    %110 = vmatpush1.bf16.msra.mxu0 0
    %111 = vmatprep.subr.bf16.mxu0 0
    %112 = vmatpush1.bf16.msra.mxu0 0
    %113 = vmatprep.subr.bf16.mxu0 %v73
    %114 = vmatpush1.bf16.msra.mxu0 %v72
    %115 = vmatprep.subr.bf16.mxu0 %v71
    %116 = vmatpush1.bf16.msra.mxu0 %v70
    %117 = vmatprep.subr.bf16.mxu0 0
    %118 = vmatpush2.bf16.msra.mxu0 0
    %119 = vmatprep.subr.bf16.mxu0 0
    %120 = vmatpush2.bf16.msra.mxu0 0
    %121 = vmatprep.subr.bf16.mxu0 0
    %122 = vmatpush2.bf16.msra.mxu0 0
    %123 = vmatprep.subr.bf16.mxu0 0
    %124 = vmatpush2.bf16.msra.mxu0 0
    %125 = vmatprep.subr.bf16.mxu0 0
    %126 = vmatpush2.bf16.msra.mxu0 0
    %127 = vmatprep.subr.bf16.mxu0 0
    %128 = vmatpush2.bf16.msra.mxu0 0
    %129 = vmatprep.subr.bf16.mxu0 0
    %130 = vmatpush2.bf16.msra.mxu0 0
    %131 = vmatprep.subr.bf16.mxu0 0
    %132 = vmatpush2.bf16.msra.mxu0 0
    %133 = vmatprep.mubr.bf16.mxu0 0
    %134 = vmatmul.mubr.bf16.gmra.mxu0 %v96
    %v135 = vpop.f32.mrf.mxu0
    %v136 = vadd.f32 %v77, %v135
    %v137 = vpop.f32.mrf.mxu0
    %v138 = vadd.f32 %v77, %v137
    %v139 = vpop.f32.mrf.mxu0
    %v140 = vadd.f32 %v82, %v139
    %v141 = vpop.f32.mrf.mxu0
    %v142 = vadd.f32 %v82, %v141
    %143 = vmatprep.mubr.bf16.mxu0 0
    %144 = vmatmul.mubr.bf16.gmra.mxu0 %v99
    %v145 = vpop.f32.mrf.mxu0
    %v146 = vadd.f32 %v87, %v145
    %v147 = vpop.f32.mrf.mxu0
    %v148 = vadd.f32 %v87, %v147
    %v149 = vpop.f32.mrf.mxu0
    %v150 = vadd.f32 %v92, %v149
    %v151 = vpop.f32.mrf.mxu0
    %v152 = vadd.f32 %v92, %v151
    %153 = vdwg.mxu0
    %v154 = vmax.f32 %v136, 0.0
    %v155 = vmax.f32 %v138, 0.0
    %v156 = vmax.f32 %v140, 0.0
    %v157 = vmax.f32 %v142, 0.0
    %v158 = vmax.f32 %v146, 0.0
    %v159 = vmax.f32 %v148, 0.0
    %v160 = vmax.f32 %v150, 0.0
    %v161 = vmax.f32 %v152, 0.0
    %162 = vset.pattern.permute.xlu0 1
    %163 = vperm.xlu0 %162, %v55
    %v164 = vpop.permute.xlu0 %163
    %166 = vset.pattern.permute.xlu0 1
    %167 = vperm.xlu0 %166, %v56
    %v168 = vpop.permute.xlu0 %167
    %170 = vset.pattern.permute.xlu0 1
    %171 = vperm.xlu0 %170, %v57
    %v172 = vpop.permute.xlu0 %171
    %174 = vset.pattern.permute.xlu0 1
    %175 = vperm.xlu0 %174, %v58
    %v176 = vpop.permute.xlu0 %175
    %v178 = vmul.f32 %v154, %v164
    %v179 = vmul.f32 %v155, %v164
    %v180 = vmul.f32 %v156, %v168
    %v181 = vmul.f32 %v157, %v168
    %v182 = vmul.f32 %v158, %v172
    %v183 = vmul.f32 %v159, %v172
    %v184 = vmul.f32 %v160, %v176
    %v185 = vmul.f32 %v161, %v176
    %186 = vset.pattern.permute.xlu0 2
    %187 = vperm.xlu0 %186, %v55
    %v188 = vpop.permute.xlu0 %187
    %190 = vset.pattern.permute.xlu0 2
    %191 = vperm.xlu0 %190, %v56
    %v192 = vpop.permute.xlu0 %191
    %194 = vset.pattern.permute.xlu0 2
    %195 = vperm.xlu0 %194, %v57
    %v196 = vpop.permute.xlu0 %195
    %198 = vset.pattern.permute.xlu0 2
    %199 = vperm.xlu0 %198, %v58
    %v200 = vpop.permute.xlu0 %199
    %v202 = vadd.f32 %v178, %v188
    %v203 = vadd.f32 %v179, %v188
    %v204 = vadd.f32 %v180, %v192
    %v205 = vadd.f32 %v181, %v192
    %v206 = vadd.f32 %v182, %v196
    %v207 = vadd.f32 %v183, %v196
    %v208 = vadd.f32 %v184, %v200
    %v209 = vadd.f32 %v185, %v200
    %v210 = vlaneseq
    %v211 = vand.u32 %v210, 127
    %v212 = vadd.s32 %v211, 128
    %v213 = vand.u32 %v211, 127
    %v214 = vand.u32 %v212, 127
    %v215 = vadd.s32 %v213, 4294967295
    %v216 = vadd.s32 %v214, 4294967295
    %vm217 = vcmp.ge.s32.totalorder %v215, 0
    %vm218 = vcmp.ge.s32.totalorder %v216, 0
    %vm219 = vcmp.lt.s32.totalorder %v215, 128
    %vm220 = vcmp.lt.s32.totalorder %v216, 128
    %vm221 = vmand %vm217, %vm219
    %vm222 = vmand %vm218, %vm220
    %v223 = vsel %vm221, 1, 0
    %v224 = vsel %vm222, 1, 0
    %v225 = vcvt.s32.f32 %v223
    %v226 = vcvt.s32.f32 %v224
    %v227 = vadd.s32 %v213, 1
    %v228 = vadd.s32 %v214, 1
    %vm229 = vcmp.ge.s32.totalorder %v227, 0
    %vm230 = vcmp.ge.s32.totalorder %v228, 0
    %vm231 = vcmp.lt.s32.totalorder %v227, 128
    %vm232 = vcmp.lt.s32.totalorder %v228, 128
    %vm233 = vmand %vm229, %vm231
    %vm234 = vmand %vm230, %vm232
    %v235 = vsel %vm233, 1, 0
    %v236 = vsel %vm234, 1, 0
    %v237 = vcvt.s32.f32 %v235
    %v238 = vcvt.s32.f32 %v236
    %240 = vrot.lane.b32.xlu0 %v203, 1
    %v241 = vpop.permute.xlu0 %240
    %244 = vrot.lane.b32.xlu0 %v202, 1
    %v245 = vpop.permute.xlu0 %244
    %vm246 = vcmask 7168
    %v247 = vsel %vm246, %v245, %v241
    %v250 = vsel %vm246, %v241, %v245
    %v251 = vmul.f32 %v250, %v225
    %v252 = vmul.f32 %v247, %v226
    %253 = vrot.lane.b32.xlu0 %v202, 127
    %v254 = vpop.permute.xlu0 %253
    %255 = vrot.lane.b32.xlu0 %v203, 127
    %v256 = vpop.permute.xlu0 %255
    %vm257 = vcmask 1039360
    %v258 = vsel %vm257, %v254, %v256
    %v262 = vsel %vm257, %v256, %v254
    %v263 = vmul.f32 %v258, %v237
    %v264 = vmul.f32 %v262, %v238
    %v265 = vld [vmem:[#allocation5 + $0x20] sm:$0xff]
    %v266 = vpack.c.bf16 %v265, %v265
    %v267 = vpack.c.bf16 %v202, %v251
    %v268 = vpack.c.bf16 %v203, %v252
    %v269 = vpack.c.bf16 %v263, %v263
    %v270 = vpack.c.bf16 %v264, %v264
    %271 = vset.pattern.permute.xlu0 8
    %272 = vperm.xlu0 %271, %v55
    %v273 = vpop.permute.xlu0 %272
    %vm275 = vcmask 195584
    %v277 = vsel %vm275, %v266, 0
    %vm279 = vcmask 1043456
    %v281 = vsel %vm279, %v269, 0
    %v284 = vsel %vm279, %v270, 0
    %286 = vmatprep.subr.bf16.mxu0 0
    %287 = vmatpush1.bf16.msra.mxu0 0
    %288 = vmatprep.subr.bf16.mxu0 0
    %289 = vmatpush1.bf16.msra.mxu0 0
    %290 = vmatprep.subr.bf16.mxu0 0
    %291 = vmatpush1.bf16.msra.mxu0 0
    %292 = vmatprep.subr.bf16.mxu0 0
    %293 = vmatpush1.bf16.msra.mxu0 0
    %294 = vmatprep.subr.bf16.mxu0 0
    %295 = vmatpush1.bf16.msra.mxu0 0
    %296 = vmatprep.subr.bf16.mxu0 0
    %297 = vmatpush1.bf16.msra.mxu0 0
    %298 = vmatprep.subr.bf16.mxu0 %v284
    %299 = vmatpush1.bf16.msra.mxu0 %v281
    %300 = vmatprep.subr.bf16.mxu0 %v268
    %301 = vmatpush1.bf16.msra.mxu0 %v267
    %302 = vmatprep.subr.bf16.mxu0 0
    %303 = vmatpush2.bf16.msra.mxu0 0
    %304 = vmatprep.subr.bf16.mxu0 0
    %305 = vmatpush2.bf16.msra.mxu0 0
    %306 = vmatprep.subr.bf16.mxu0 0
    %307 = vmatpush2.bf16.msra.mxu0 0
    %308 = vmatprep.subr.bf16.mxu0 0
    %309 = vmatpush2.bf16.msra.mxu0 0
    %310 = vmatprep.subr.bf16.mxu0 0
    %311 = vmatpush2.bf16.msra.mxu0 0
    %312 = vmatprep.subr.bf16.mxu0 0
    %313 = vmatpush2.bf16.msra.mxu0 0
    %314 = vmatprep.subr.bf16.mxu0 0
    %315 = vmatpush2.bf16.msra.mxu0 0
    %316 = vmatprep.subr.bf16.mxu0 0
    %317 = vmatpush2.bf16.msra.mxu0 0
    %318 = vmatprep.mubr.bf16.mxu0 0
    %319 = vmatmul.mubr.bf16.gmra.mxu0 %v277
    %v320 = vpop.f32.mrf.mxu0
    %v321 = vadd.f32 %v273, %v320
    %v322 = vpop.f32.mrf.mxu0
    %v323 = vadd.f32 %v273, %v322
    %v324 = vpop.f32.mrf.mxu0
    %v325 = vpop.f32.mrf.mxu0
    %326 = vdwg.mxu0
    %v327 = vmax.f32 %v321, 0.0
    %v328 = vmax.f32 %v323, 0.0
    %329 = vset.pattern.permute.xlu0 9
    %330 = vperm.xlu0 %329, %v55
    %v331 = vpop.permute.xlu0 %330
    %v333 = vmul.f32 %v327, %v331
    %v334 = vmul.f32 %v328, %v331
    %335 = vset.pattern.permute.xlu0 10
    %336 = vperm.xlu0 %335, %v55
    %v337 = vpop.permute.xlu0 %336
    %v339 = vadd.f32 %v333, %v337
    %v340 = vadd.f32 %v334, %v337
    %v341 = vadd.f32 %v339, %v204
    %v342 = vadd.f32 %v340, %v205
    %344 = vrot.lane.b32.xlu0 %v342, 1
    %v345 = vpop.permute.xlu0 %344
    %348 = vrot.lane.b32.xlu0 %v341, 1
    %v349 = vpop.permute.xlu0 %348
    %v350 = vsel %vm246, %v349, %v345
    %v353 = vsel %vm246, %v345, %v349
    %v354 = vmul.f32 %v353, %v225
    %v355 = vmul.f32 %v350, %v226
    %356 = vrot.lane.b32.xlu0 %v341, 127
    %v357 = vpop.permute.xlu0 %356
    %358 = vrot.lane.b32.xlu0 %v342, 127
    %v359 = vpop.permute.xlu0 %358
    %v360 = vsel %vm257, %v357, %v359
    %v364 = vsel %vm257, %v359, %v357
    %v365 = vmul.f32 %v360, %v237
    %v366 = vmul.f32 %v364, %v238
    %v367 = vld [vmem:[#allocation5 + $0x28] sm:$0xff]
    %v368 = vpack.c.bf16 %v367, %v367
    %v369 = vpack.c.bf16 %v341, %v354
    %v370 = vpack.c.bf16 %v342, %v355
    %v371 = vpack.c.bf16 %v365, %v365
    %v372 = vpack.c.bf16 %v366, %v366
    %373 = vset.pattern.permute.xlu0 8
    %374 = vperm.xlu0 %373, %v56
    %v375 = vpop.permute.xlu0 %374
    %v378 = vsel %vm275, %v368, 0
    %v381 = vsel %vm279, %v371, 0
    %v384 = vsel %vm279, %v372, 0
    %386 = vmatprep.subr.bf16.mxu0 0
    %387 = vmatpush1.bf16.msra.mxu0 0
    %388 = vmatprep.subr.bf16.mxu0 0
    %389 = vmatpush1.bf16.msra.mxu0 0
    %390 = vmatprep.subr.bf16.mxu0 0
    %391 = vmatpush1.bf16.msra.mxu0 0
    %392 = vmatprep.subr.bf16.mxu0 0
    %393 = vmatpush1.bf16.msra.mxu0 0
    %394 = vmatprep.subr.bf16.mxu0 0
    %395 = vmatpush1.bf16.msra.mxu0 0
    %396 = vmatprep.subr.bf16.mxu0 0
    %397 = vmatpush1.bf16.msra.mxu0 0
    %398 = vmatprep.subr.bf16.mxu0 %v384
    %399 = vmatpush1.bf16.msra.mxu0 %v381
    %400 = vmatprep.subr.bf16.mxu0 %v370
    %401 = vmatpush1.bf16.msra.mxu0 %v369
    %402 = vmatprep.subr.bf16.mxu0 0
    %403 = vmatpush2.bf16.msra.mxu0 0
    %404 = vmatprep.subr.bf16.mxu0 0
    %405 = vmatpush2.bf16.msra.mxu0 0
    %406 = vmatprep.subr.bf16.mxu0 0
    %407 = vmatpush2.bf16.msra.mxu0 0
    %408 = vmatprep.subr.bf16.mxu0 0
    %409 = vmatpush2.bf16.msra.mxu0 0
    %410 = vmatprep.subr.bf16.mxu0 0
    %411 = vmatpush2.bf16.msra.mxu0 0
    %412 = vmatprep.subr.bf16.mxu0 0
    %413 = vmatpush2.bf16.msra.mxu0 0
    %414 = vmatprep.subr.bf16.mxu0 0
    %415 = vmatpush2.bf16.msra.mxu0 0
    %416 = vmatprep.subr.bf16.mxu0 0
    %417 = vmatpush2.bf16.msra.mxu0 0
    %418 = vmatprep.mubr.bf16.mxu0 0
    %419 = vmatmul.mubr.bf16.gmra.mxu0 %v378
    %v420 = vpop.f32.mrf.mxu0
    %v421 = vadd.f32 %v375, %v420
    %v422 = vpop.f32.mrf.mxu0
    %v423 = vadd.f32 %v375, %v422
    %v424 = vpop.f32.mrf.mxu0
    %v425 = vpop.f32.mrf.mxu0
    %426 = vdwg.mxu0
    %v427 = vmax.f32 %v421, 0.0
    %v428 = vmax.f32 %v423, 0.0
    %429 = vset.pattern.permute.xlu0 9
    %430 = vperm.xlu0 %429, %v56
    %v431 = vpop.permute.xlu0 %430
    %v433 = vmul.f32 %v427, %v431
    %v434 = vmul.f32 %v428, %v431
    %435 = vset.pattern.permute.xlu0 10
    %436 = vperm.xlu0 %435, %v56
    %v437 = vpop.permute.xlu0 %436
    %v439 = vadd.f32 %v433, %v437
    %v440 = vadd.f32 %v434, %v437
    %v441 = vadd.f32 %v439, %v206
    %v442 = vadd.f32 %v440, %v207
    %444 = vrot.lane.b32.xlu0 %v442, 1
    %v445 = vpop.permute.xlu0 %444
    %448 = vrot.lane.b32.xlu0 %v441, 1
    %v449 = vpop.permute.xlu0 %448
    %v450 = vsel %vm246, %v449, %v445
    %v453 = vsel %vm246, %v445, %v449
    %v454 = vmul.f32 %v453, %v225
    %v455 = vmul.f32 %v450, %v226
    %456 = vrot.lane.b32.xlu0 %v441, 127
    %v457 = vpop.permute.xlu0 %456
    %458 = vrot.lane.b32.xlu0 %v442, 127
    %v459 = vpop.permute.xlu0 %458
    %v460 = vsel %vm257, %v457, %v459
    %v464 = vsel %vm257, %v459, %v457
    %v465 = vmul.f32 %v460, %v237
    %v466 = vmul.f32 %v464, %v238
    %v467 = vld [vmem:[#allocation5 + $0x30] sm:$0xff]
    %v468 = vpack.c.bf16 %v467, %v467
    %v469 = vpack.c.bf16 %v441, %v454
    %v470 = vpack.c.bf16 %v442, %v455
    %v471 = vpack.c.bf16 %v465, %v465
    %v472 = vpack.c.bf16 %v466, %v466
    %473 = vset.pattern.permute.xlu0 8
    %474 = vperm.xlu0 %473, %v57
    %v475 = vpop.permute.xlu0 %474
    %v478 = vsel %vm275, %v468, 0
    %v481 = vsel %vm279, %v471, 0
    %v484 = vsel %vm279, %v472, 0
    %486 = vmatprep.subr.bf16.mxu0 0
    %487 = vmatpush1.bf16.msra.mxu0 0
    %488 = vmatprep.subr.bf16.mxu0 0
    %489 = vmatpush1.bf16.msra.mxu0 0
    %490 = vmatprep.subr.bf16.mxu0 0
    %491 = vmatpush1.bf16.msra.mxu0 0
    %492 = vmatprep.subr.bf16.mxu0 0
    %493 = vmatpush1.bf16.msra.mxu0 0
    %494 = vmatprep.subr.bf16.mxu0 0
    %495 = vmatpush1.bf16.msra.mxu0 0
    %496 = vmatprep.subr.bf16.mxu0 0
    %497 = vmatpush1.bf16.msra.mxu0 0
    %498 = vmatprep.subr.bf16.mxu0 %v484
    %499 = vmatpush1.bf16.msra.mxu0 %v481
    %500 = vmatprep.subr.bf16.mxu0 %v470
    %501 = vmatpush1.bf16.msra.mxu0 %v469
    %502 = vmatprep.subr.bf16.mxu0 0
    %503 = vmatpush2.bf16.msra.mxu0 0
    %504 = vmatprep.subr.bf16.mxu0 0
    %505 = vmatpush2.bf16.msra.mxu0 0
    %506 = vmatprep.subr.bf16.mxu0 0
    %507 = vmatpush2.bf16.msra.mxu0 0
    %508 = vmatprep.subr.bf16.mxu0 0
    %509 = vmatpush2.bf16.msra.mxu0 0
    %510 = vmatprep.subr.bf16.mxu0 0
    %511 = vmatpush2.bf16.msra.mxu0 0
    %512 = vmatprep.subr.bf16.mxu0 0
    %513 = vmatpush2.bf16.msra.mxu0 0
    %514 = vmatprep.subr.bf16.mxu0 0
    %515 = vmatpush2.bf16.msra.mxu0 0
    %516 = vmatprep.subr.bf16.mxu0 0
    %517 = vmatpush2.bf16.msra.mxu0 0
    %518 = vmatprep.mubr.bf16.mxu0 0
    %519 = vmatmul.mubr.bf16.gmra.mxu0 %v478
    %v520 = vpop.f32.mrf.mxu0
    %v521 = vadd.f32 %v475, %v520
    %v522 = vpop.f32.mrf.mxu0
    %v523 = vadd.f32 %v475, %v522
    %v524 = vpop.f32.mrf.mxu0
    %v525 = vpop.f32.mrf.mxu0
    %526 = vdwg.mxu0
    %v527 = vmax.f32 %v521, 0.0
    %v528 = vmax.f32 %v523, 0.0
    %529 = vset.pattern.permute.xlu0 9
    %530 = vperm.xlu0 %529, %v57
    %v531 = vpop.permute.xlu0 %530
    %v533 = vmul.f32 %v527, %v531
    %v534 = vmul.f32 %v528, %v531
    %535 = vset.pattern.permute.xlu0 10
    %536 = vperm.xlu0 %535, %v57
    %v537 = vpop.permute.xlu0 %536
    %v539 = vadd.f32 %v533, %v537
    %v540 = vadd.f32 %v534, %v537
    %v541 = vpack.c.bf16 %v46, %v45
    %v542 = vpack.c.bf16 %v48, %v47
    %v543 = vpack.c.bf16 %v439, %v339
    %v544 = vpack.c.bf16 %v440, %v340
    %v545 = vpack.c.bf16 %v208, %v539
    %v546 = vpack.c.bf16 %v209, %v540
    %547 = vset.pattern.permute.xlu0 3
    %548 = vperm.xlu0 %547, %v55
    %v549 = vpop.permute.xlu0 %548
    %551 = vset.pattern.permute.xlu0 3
    %552 = vperm.xlu0 %551, %v56
    %v553 = vpop.permute.xlu0 %552
    %555 = vset.pattern.permute.xlu0 3
    %556 = vperm.xlu0 %555, %v57
    %v557 = vpop.permute.xlu0 %556
    %559 = vset.pattern.permute.xlu0 3
    %560 = vperm.xlu0 %559, %v58
    %v561 = vpop.permute.xlu0 %560
    %v564 = vsel %vm94, %v541, 0
    %v567 = vsel %vm94, %v542, 0
    %569 = vmatprep.subr.bf16.mxu0 0
    %570 = vmatpush1.bf16.msra.mxu0 0
    %571 = vmatprep.subr.bf16.mxu0 0
    %572 = vmatpush1.bf16.msra.mxu0 0
    %573 = vmatprep.subr.bf16.mxu0 0
    %574 = vmatpush1.bf16.msra.mxu0 0
    %575 = vmatprep.subr.bf16.mxu0 0
    %576 = vmatpush1.bf16.msra.mxu0 0
    %577 = vmatprep.subr.bf16.mxu0 0
    %578 = vmatpush1.bf16.msra.mxu0 0
    %579 = vmatprep.subr.bf16.mxu0 0
    %580 = vmatpush1.bf16.msra.mxu0 0
    %581 = vmatprep.subr.bf16.mxu0 %v546
    %582 = vmatpush1.bf16.msra.mxu0 %v545
    %583 = vmatprep.subr.bf16.mxu0 %v544
    %584 = vmatpush1.bf16.msra.mxu0 %v543
    %585 = vmatprep.subr.bf16.mxu0 0
    %586 = vmatpush2.bf16.msra.mxu0 0
    %587 = vmatprep.subr.bf16.mxu0 0
    %588 = vmatpush2.bf16.msra.mxu0 0
    %589 = vmatprep.subr.bf16.mxu0 0
    %590 = vmatpush2.bf16.msra.mxu0 0
    %591 = vmatprep.subr.bf16.mxu0 0
    %592 = vmatpush2.bf16.msra.mxu0 0
    %593 = vmatprep.subr.bf16.mxu0 0
    %594 = vmatpush2.bf16.msra.mxu0 0
    %595 = vmatprep.subr.bf16.mxu0 0
    %596 = vmatpush2.bf16.msra.mxu0 0
    %597 = vmatprep.subr.bf16.mxu0 0
    %598 = vmatpush2.bf16.msra.mxu0 0
    %599 = vmatprep.subr.bf16.mxu0 0
    %600 = vmatpush2.bf16.msra.mxu0 0
    %601 = vmatprep.mubr.bf16.mxu0 0
    %602 = vmatmul.mubr.bf16.gmra.mxu0 %v564
    %v603 = vpop.f32.mrf.mxu0
    %v604 = vadd.f32 %v549, %v603
    %v605 = vpop.f32.mrf.mxu0
    %v606 = vadd.f32 %v549, %v605
    %v607 = vpop.f32.mrf.mxu0
    %v608 = vadd.f32 %v553, %v607
    %v609 = vpop.f32.mrf.mxu0
    %v610 = vadd.f32 %v553, %v609
    %611 = vmatprep.mubr.bf16.mxu0 0
    %612 = vmatmul.mubr.bf16.gmra.mxu0 %v567
    %v613 = vpop.f32.mrf.mxu0
    %v614 = vadd.f32 %v557, %v613
    %v615 = vpop.f32.mrf.mxu0
    %v616 = vadd.f32 %v557, %v615
    %v617 = vpop.f32.mrf.mxu0
    %v618 = vadd.f32 %v561, %v617
    %v619 = vpop.f32.mrf.mxu0
    %v620 = vadd.f32 %v561, %v619
    %621 = vdwg.mxu0
    %v622 = vmax.f32 %v604, 0.0
    %v623 = vmax.f32 %v606, 0.0
    %v624 = vmax.f32 %v608, 0.0
    %v625 = vmax.f32 %v610, 0.0
    %v626 = vmax.f32 %v614, 0.0
    %v627 = vmax.f32 %v616, 0.0
    %v628 = vmax.f32 %v618, 0.0
    %v629 = vmax.f32 %v620, 0.0
    %630 = vset.pattern.permute.xlu0 4
    %631 = vperm.xlu0 %630, %v55
    %v632 = vpop.permute.xlu0 %631
    %634 = vset.pattern.permute.xlu0 4
    %635 = vperm.xlu0 %634, %v56
    %v636 = vpop.permute.xlu0 %635
    %638 = vset.pattern.permute.xlu0 4
    %639 = vperm.xlu0 %638, %v57
    %v640 = vpop.permute.xlu0 %639
    %642 = vset.pattern.permute.xlu0 4
    %643 = vperm.xlu0 %642, %v58
    %v644 = vpop.permute.xlu0 %643
    %v646 = vmul.f32 %v622, %v632
    %v647 = vmul.f32 %v623, %v632
    %v648 = vmul.f32 %v624, %v636
    %v649 = vmul.f32 %v625, %v636
    %v650 = vmul.f32 %v626, %v640
    %v651 = vmul.f32 %v627, %v640
    %v652 = vmul.f32 %v628, %v644
    %v653 = vmul.f32 %v629, %v644
    %654 = vset.pattern.permute.xlu0 5
    %655 = vperm.xlu0 %654, %v55
    %v656 = vpop.permute.xlu0 %655
    %658 = vset.pattern.permute.xlu0 5
    %659 = vperm.xlu0 %658, %v56
    %v660 = vpop.permute.xlu0 %659
    %662 = vset.pattern.permute.xlu0 5
    %663 = vperm.xlu0 %662, %v57
    %v664 = vpop.permute.xlu0 %663
    %666 = vset.pattern.permute.xlu0 5
    %667 = vperm.xlu0 %666, %v58
    %v668 = vpop.permute.xlu0 %667
    %v670 = vadd.f32 %v646, %v656
    %v671 = vadd.f32 %v647, %v656
    %v672 = vadd.f32 %v648, %v660
    %v673 = vadd.f32 %v649, %v660
    %v674 = vadd.f32 %v650, %v664
    %v675 = vadd.f32 %v651, %v664
    %v676 = vadd.f32 %v652, %v668
    %v677 = vadd.f32 %v653, %v668
    %v678 = vlaneseq
    %v679 = vshrl.u32 %v678, 7
    %v680 = vadd.s32 %v679, 8
    %v681 = vadd.s32 %v679, 16
    %v682 = vadd.s32 %v679, 24
    %v683 = vadd.s32 %v679, 32
    %v684 = vadd.s32 %v679, 40
    %v685 = vadd.s32 %v679, 48
    %v686 = vadd.s32 %v679, 56
    %v687 = vadd.s32 %v679, 64
    %v688 = vadd.s32 %v679, 72
    %v689 = vadd.s32 %v679, 80
    %v690 = vadd.s32 %v679, 88
    %v691 = vadd.s32 %v679, 96
    %v692 = vadd.s32 %v679, 104
    %v693 = vadd.s32 %v679, 112
    %v694 = vadd.s32 %v679, 120
    %v695 = vadd.s32 %v679, 128
    %v696 = vadd.s32 %v679, 136
    %v697 = vadd.s32 %v679, 144
    %v698 = vadd.s32 %v679, 152
    %v699 = vadd.s32 %v679, 160
    %v700 = vadd.s32 %v679, 168
    %v701 = vadd.s32 %v679, 176
    %v702 = vadd.s32 %v679, 184
    %v703 = vadd.s32 %v679, 192
    %v704 = vadd.s32 %v679, 200
    %v705 = vadd.s32 %v679, 208
    %v706 = vadd.s32 %v679, 216
    %v707 = vadd.s32 %v679, 224
    %v708 = vadd.s32 %v679, 232
    %v709 = vadd.s32 %v679, 240
    %v710 = vadd.s32 %v679, 248
    %v711 = vmul.u32 %v211, 128
    %v712 = vsub.s32 %v679, %v711
    %v713 = vsub.s32 %v680, %v711
    %v714 = vsub.s32 %v681, %v711
    %v715 = vsub.s32 %v682, %v711
    %v716 = vsub.s32 %v683, %v711
    %v717 = vsub.s32 %v684, %v711
    %v718 = vsub.s32 %v685, %v711
    %v719 = vsub.s32 %v686, %v711
    %v720 = vsub.s32 %v687, %v711
    %v721 = vsub.s32 %v688, %v711
    %v722 = vsub.s32 %v689, %v711
    %v723 = vsub.s32 %v690, %v711
    %v724 = vsub.s32 %v691, %v711
    %v725 = vsub.s32 %v692, %v711
    %v726 = vsub.s32 %v693, %v711
    %v727 = vsub.s32 %v694, %v711
    %v728 = vsub.s32 %v695, %v711
    %v729 = vsub.s32 %v696, %v711
    %v730 = vsub.s32 %v697, %v711
    %v731 = vsub.s32 %v698, %v711
    %v732 = vsub.s32 %v699, %v711
    %v733 = vsub.s32 %v700, %v711
    %v734 = vsub.s32 %v701, %v711
    %v735 = vsub.s32 %v702, %v711
    %v736 = vsub.s32 %v703, %v711
    %v737 = vsub.s32 %v704, %v711
    %v738 = vsub.s32 %v705, %v711
    %v739 = vsub.s32 %v706, %v711
    %v740 = vsub.s32 %v707, %v711
    %v741 = vsub.s32 %v708, %v711
    %v742 = vsub.s32 %v709, %v711
    %v743 = vsub.s32 %v710, %v711
    %vm744 = vcmp.ge.s32.totalorder %v712, 0
    %vm745 = vcmp.ge.s32.totalorder %v713, 0
    %vm746 = vcmp.ge.s32.totalorder %v714, 0
    %vm747 = vcmp.ge.s32.totalorder %v715, 0
    %vm748 = vcmp.ge.s32.totalorder %v716, 0
    %vm749 = vcmp.ge.s32.totalorder %v717, 0
    %vm750 = vcmp.ge.s32.totalorder %v718, 0
    %vm751 = vcmp.ge.s32.totalorder %v719, 0
    %vm752 = vcmp.ge.s32.totalorder %v720, 0
    %vm753 = vcmp.ge.s32.totalorder %v721, 0
    %vm754 = vcmp.ge.s32.totalorder %v722, 0
    %vm755 = vcmp.ge.s32.totalorder %v723, 0
    %vm756 = vcmp.ge.s32.totalorder %v724, 0
    %vm757 = vcmp.ge.s32.totalorder %v725, 0
    %vm758 = vcmp.ge.s32.totalorder %v726, 0
    %vm759 = vcmp.ge.s32.totalorder %v727, 0
    %vm760 = vcmp.ge.s32.totalorder %v728, 0
    %vm761 = vcmp.ge.s32.totalorder %v729, 0
    %vm762 = vcmp.ge.s32.totalorder %v730, 0
    %vm763 = vcmp.ge.s32.totalorder %v731, 0
    %vm764 = vcmp.ge.s32.totalorder %v732, 0
    %vm765 = vcmp.ge.s32.totalorder %v733, 0
    %vm766 = vcmp.ge.s32.totalorder %v734, 0
    %vm767 = vcmp.ge.s32.totalorder %v735, 0
    %vm768 = vcmp.ge.s32.totalorder %v736, 0
    %vm769 = vcmp.ge.s32.totalorder %v737, 0
    %vm770 = vcmp.ge.s32.totalorder %v738, 0
    %vm771 = vcmp.ge.s32.totalorder %v739, 0
    %vm772 = vcmp.ge.s32.totalorder %v740, 0
    %vm773 = vcmp.ge.s32.totalorder %v741, 0
    %vm774 = vcmp.ge.s32.totalorder %v742, 0
    %vm775 = vcmp.ge.s32.totalorder %v743, 0
    %vm776 = vcmp.lt.s32.totalorder %v712, 128
    %vm777 = vcmp.lt.s32.totalorder %v713, 128
    %vm778 = vcmp.lt.s32.totalorder %v714, 128
    %vm779 = vcmp.lt.s32.totalorder %v715, 128
    %vm780 = vcmp.lt.s32.totalorder %v716, 128
    %vm781 = vcmp.lt.s32.totalorder %v717, 128
    %vm782 = vcmp.lt.s32.totalorder %v718, 128
    %vm783 = vcmp.lt.s32.totalorder %v719, 128
    %vm784 = vcmp.lt.s32.totalorder %v720, 128
    %vm785 = vcmp.lt.s32.totalorder %v721, 128
    %vm786 = vcmp.lt.s32.totalorder %v722, 128
    %vm787 = vcmp.lt.s32.totalorder %v723, 128
    %vm788 = vcmp.lt.s32.totalorder %v724, 128
    %vm789 = vcmp.lt.s32.totalorder %v725, 128
    %vm790 = vcmp.lt.s32.totalorder %v726, 128
    %vm791 = vcmp.lt.s32.totalorder %v727, 128
    %vm792 = vcmp.lt.s32.totalorder %v728, 128
    %vm793 = vcmp.lt.s32.totalorder %v729, 128
    %vm794 = vcmp.lt.s32.totalorder %v730, 128
    %vm795 = vcmp.lt.s32.totalorder %v731, 128
    %vm796 = vcmp.lt.s32.totalorder %v732, 128
    %vm797 = vcmp.lt.s32.totalorder %v733, 128
    %vm798 = vcmp.lt.s32.totalorder %v734, 128
    %vm799 = vcmp.lt.s32.totalorder %v735, 128
    %vm800 = vcmp.lt.s32.totalorder %v736, 128
    %vm801 = vcmp.lt.s32.totalorder %v737, 128
    %vm802 = vcmp.lt.s32.totalorder %v738, 128
    %vm803 = vcmp.lt.s32.totalorder %v739, 128
    %vm804 = vcmp.lt.s32.totalorder %v740, 128
    %vm805 = vcmp.lt.s32.totalorder %v741, 128
    %vm806 = vcmp.lt.s32.totalorder %v742, 128
    %vm807 = vcmp.lt.s32.totalorder %v743, 128
    %vm808 = vmand %vm744, %vm776
    %vm809 = vmand %vm745, %vm777
    %vm810 = vmand %vm746, %vm778
    %vm811 = vmand %vm747, %vm779
    %vm812 = vmand %vm748, %vm780
    %vm813 = vmand %vm749, %vm781
    %vm814 = vmand %vm750, %vm782
    %vm815 = vmand %vm751, %vm783
    %vm816 = vmand %vm752, %vm784
    %vm817 = vmand %vm753, %vm785
    %vm818 = vmand %vm754, %vm786
    %vm819 = vmand %vm755, %vm787
    %vm820 = vmand %vm756, %vm788
    %vm821 = vmand %vm757, %vm789
    %vm822 = vmand %vm758, %vm790
    %vm823 = vmand %vm759, %vm791
    %vm824 = vmand %vm760, %vm792
    %vm825 = vmand %vm761, %vm793
    %vm826 = vmand %vm762, %vm794
    %vm827 = vmand %vm763, %vm795
    %vm828 = vmand %vm764, %vm796
    %vm829 = vmand %vm765, %vm797
    %vm830 = vmand %vm766, %vm798
    %vm831 = vmand %vm767, %vm799
    %vm832 = vmand %vm768, %vm800
    %vm833 = vmand %vm769, %vm801
    %vm834 = vmand %vm770, %vm802
    %vm835 = vmand %vm771, %vm803
    %vm836 = vmand %vm772, %vm804
    %vm837 = vmand %vm773, %vm805
    %vm838 = vmand %vm774, %vm806
    %vm839 = vmand %vm775, %vm807
    %v840 = vsel %vm808, 0.0078125, 0.0
    %v841 = vsel %vm809, 0.0078125, 0.0
    %v842 = vsel %vm810, 0.0078125, 0.0
    %v843 = vsel %vm811, 0.0078125, 0.0
    %v844 = vsel %vm812, 0.0078125, 0.0
    %v845 = vsel %vm813, 0.0078125, 0.0
    %v846 = vsel %vm814, 0.0078125, 0.0
    %v847 = vsel %vm815, 0.0078125, 0.0
    %v848 = vsel %vm816, 0.0078125, 0.0
    %v849 = vsel %vm817, 0.0078125, 0.0
    %v850 = vsel %vm818, 0.0078125, 0.0
    %v851 = vsel %vm819, 0.0078125, 0.0
    %v852 = vsel %vm820, 0.0078125, 0.0
    %v853 = vsel %vm821, 0.0078125, 0.0
    %v854 = vsel %vm822, 0.0078125, 0.0
    %v855 = vsel %vm823, 0.0078125, 0.0
    %v856 = vsel %vm824, 0.0078125, 0.0
    %v857 = vsel %vm825, 0.0078125, 0.0
    %v858 = vsel %vm826, 0.0078125, 0.0
    %v859 = vsel %vm827, 0.0078125, 0.0
    %v860 = vsel %vm828, 0.0078125, 0.0
    %v861 = vsel %vm829, 0.0078125, 0.0
    %v862 = vsel %vm830, 0.0078125, 0.0
    %v863 = vsel %vm831, 0.0078125, 0.0
    %v864 = vsel %vm832, 0.0078125, 0.0
    %v865 = vsel %vm833, 0.0078125, 0.0
    %v866 = vsel %vm834, 0.0078125, 0.0
    %v867 = vsel %vm835, 0.0078125, 0.0
    %v868 = vsel %vm836, 0.0078125, 0.0
    %v869 = vsel %vm837, 0.0078125, 0.0
    %v870 = vsel %vm838, 0.0078125, 0.0
    %v871 = vsel %vm839, 0.0078125, 0.0
    %v872 = vpack.c.bf16 %v672, %v670
    %v873 = vpack.c.bf16 %v673, %v671
    %v874 = vpack.c.bf16 %v676, %v674
    %v875 = vpack.c.bf16 %v677, %v675
    %v876 = vpack.c.bf16 %v841, %v840
    %v877 = vpack.c.bf16 %v843, %v842
    %v878 = vpack.c.bf16 %v845, %v844
    %v879 = vpack.c.bf16 %v847, %v846
    %v880 = vpack.c.bf16 %v849, %v848
    %v881 = vpack.c.bf16 %v851, %v850
    %v882 = vpack.c.bf16 %v853, %v852
    %v883 = vpack.c.bf16 %v855, %v854
    %v884 = vpack.c.bf16 %v857, %v856
    %v885 = vpack.c.bf16 %v859, %v858
    %v886 = vpack.c.bf16 %v861, %v860
    %v887 = vpack.c.bf16 %v863, %v862
    %v888 = vpack.c.bf16 %v865, %v864
    %v889 = vpack.c.bf16 %v867, %v866
    %v890 = vpack.c.bf16 %v869, %v868
    %v891 = vpack.c.bf16 %v871, %v870
    %892 = vmatprep.subr.bf16.mxu0 0
    %893 = vmatpush1.bf16.msra.mxu0 %v883
    %894 = vmatprep.subr.bf16.mxu0 0
    %895 = vmatpush1.bf16.msra.mxu0 %v882
    %896 = vmatprep.subr.bf16.mxu0 0
    %897 = vmatpush1.bf16.msra.mxu0 %v881
    %898 = vmatprep.subr.bf16.mxu0 0
    %899 = vmatpush1.bf16.msra.mxu0 %v880
    %900 = vmatprep.subr.bf16.mxu0 0
    %901 = vmatpush1.bf16.msra.mxu0 %v879
    %902 = vmatprep.subr.bf16.mxu0 0
    %903 = vmatpush1.bf16.msra.mxu0 %v878
    %904 = vmatprep.subr.bf16.mxu0 0
    %905 = vmatpush1.bf16.msra.mxu0 %v877
    %906 = vmatprep.subr.bf16.mxu0 0
    %907 = vmatpush1.bf16.msra.mxu0 %v876
    %908 = vmatprep.subr.bf16.mxu0 0
    %909 = vmatpush2.bf16.msra.mxu0 %v891
    %910 = vmatprep.subr.bf16.mxu0 0
    %911 = vmatpush2.bf16.msra.mxu0 %v890
    %912 = vmatprep.subr.bf16.mxu0 0
    %913 = vmatpush2.bf16.msra.mxu0 %v889
    %914 = vmatprep.subr.bf16.mxu0 0
    %915 = vmatpush2.bf16.msra.mxu0 %v888
    %916 = vmatprep.subr.bf16.mxu0 0
    %917 = vmatpush2.bf16.msra.mxu0 %v887
    %918 = vmatprep.subr.bf16.mxu0 0
    %919 = vmatpush2.bf16.msra.mxu0 %v886
    %920 = vmatprep.subr.bf16.mxu0 0
    %921 = vmatpush2.bf16.msra.mxu0 %v885
    %922 = vmatprep.subr.bf16.mxu0 0
    %923 = vmatpush2.bf16.msra.mxu0 %v884
    %924 = vmatprep.mubr.bf16.mxu0 %v873
    %925 = vmatmul.mubr.bf16.gmra.mxu0 %v872
    %v926 = vpop.f32.mrf.mxu0
    %v927 = vadd.f32 0.0, %v926
    %v928 = vpop.f32.mrf.mxu0
    %v929 = vpop.f32.mrf.mxu0
    %v930 = vadd.f32 0.0, %v929
    %v931 = vpop.f32.mrf.mxu0
    %932 = vmatprep.mubr.bf16.mxu0 %v875
    %933 = vmatmul.mubr.bf16.gmra.mxu0 %v874
    %v934 = vpop.f32.mrf.mxu0
    %v935 = vadd.f32 0.0, %v934
    %v936 = vpop.f32.mrf.mxu0
    %v937 = vpop.f32.mrf.mxu0
    %v938 = vadd.f32 0.0, %v937
    %v939 = vpop.f32.mrf.mxu0
    %940 = vdwg.mxu0
    %v941 = vpack.c.bf16 %v50, %v49
    %v942 = vpack.c.bf16 %v930, %v927
    %v943 = vpack.c.bf16 %v938, %v935
    %944 = vset.pattern.permute.xlu0 6
    %945 = vperm.xlu0 %944, %v55
    %v946 = vpop.permute.xlu0 %945
    %948 = vset.pattern.permute.xlu0 6
    %949 = vperm.xlu0 %948, %v56
    %v950 = vpop.permute.xlu0 %949
    %v953 = vsel %vm94, %v941, 0
    %955 = vmatprep.subr.bf16.mxu0 0
    %956 = vmatpush1.bf16.msra.mxu0 0
    %957 = vmatprep.subr.bf16.mxu0 0
    %958 = vmatpush1.bf16.msra.mxu0 0
    %959 = vmatprep.subr.bf16.mxu0 0
    %960 = vmatpush1.bf16.msra.mxu0 0
    %961 = vmatprep.subr.bf16.mxu0 0
    %962 = vmatpush1.bf16.msra.mxu0 0
    %963 = vmatprep.subr.bf16.mxu0 0
    %964 = vmatpush1.bf16.msra.mxu0 0
    %965 = vmatprep.subr.bf16.mxu0 0
    %966 = vmatpush1.bf16.msra.mxu0 0
    %967 = vmatprep.subr.bf16.mxu0 0
    %968 = vmatpush1.bf16.msra.mxu0 %v943
    %969 = vmatprep.subr.bf16.mxu0 0
    %970 = vmatpush1.bf16.msra.mxu0 %v942
    %971 = vmatprep.subr.bf16.mxu0 0
    %972 = vmatpush2.bf16.msra.mxu0 0
    %973 = vmatprep.subr.bf16.mxu0 0
    %974 = vmatpush2.bf16.msra.mxu0 0
    %975 = vmatprep.subr.bf16.mxu0 0
    %976 = vmatpush2.bf16.msra.mxu0 0
    %977 = vmatprep.subr.bf16.mxu0 0
    %978 = vmatpush2.bf16.msra.mxu0 0
    %979 = vmatprep.subr.bf16.mxu0 0
    %980 = vmatpush2.bf16.msra.mxu0 0
    %981 = vmatprep.subr.bf16.mxu0 0
    %982 = vmatpush2.bf16.msra.mxu0 0
    %983 = vmatprep.subr.bf16.mxu0 0
    %984 = vmatpush2.bf16.msra.mxu0 0
    %985 = vmatprep.subr.bf16.mxu0 0
    %986 = vmatpush2.bf16.msra.mxu0 0
    %987 = vmatprep.mubr.bf16.mxu0 0
    %988 = vmatmul.mubr.bf16.gmra.mxu0 %v953
    %v989 = vpop.f32.mrf.mxu0
    %v990 = vadd.f32 %v946, %v989
    %v991 = vpop.f32.mrf.mxu0
    %v992 = vpop.f32.mrf.mxu0
    %v993 = vadd.f32 %v950, %v992
    %v994 = vpop.f32.mrf.mxu0
    %995 = vdwg.mxu0
    %v996 = vmax.f32 %v990, 0.0
    %v997 = vmax.f32 %v993, 0.0
    %v998 = vpack.c.bf16 %v52, %v51
    %v999 = vpack.c.bf16 %v54, %v53
    %v1000 = vpack.c.bf16 %v997, %v996
    %1001 = vset.pattern.permute.xlu0 7
    %1002 = vperm.xlu0 %1001, %v55
    %v1003 = vpop.permute.xlu0 %1002
    %1005 = vset.pattern.permute.xlu0 7
    %1006 = vperm.xlu0 %1005, %v56
    %v1007 = vpop.permute.xlu0 %1006
    %1009 = vset.pattern.permute.xlu0 7
    %1010 = vperm.xlu0 %1009, %v57
    %v1011 = vpop.permute.xlu0 %1010
    %1013 = vset.pattern.permute.xlu0 7
    %1014 = vperm.xlu0 %1013, %v58
    %v1015 = vpop.permute.xlu0 %1014
    %vm1017 = vcmask 130048
    %v1019 = vsel %vm1017, %v998, 0
    %v1022 = vsel %vm1017, %v999, 0
    %1024 = vmatprep.subr.bf16.mxu0 0
    %1025 = vmatpush1.bf16.msra.mxu0 0
    %1026 = vmatprep.subr.bf16.mxu0 0
    %1027 = vmatpush1.bf16.msra.mxu0 0
    %1028 = vmatprep.subr.bf16.mxu0 0
    %1029 = vmatpush1.bf16.msra.mxu0 0
    %1030 = vmatprep.subr.bf16.mxu0 0
    %1031 = vmatpush1.bf16.msra.mxu0 0
    %1032 = vmatprep.subr.bf16.mxu0 0
    %1033 = vmatpush1.bf16.msra.mxu0 0
    %1034 = vmatprep.subr.bf16.mxu0 0
    %1035 = vmatpush1.bf16.msra.mxu0 0
    %1036 = vmatprep.subr.bf16.mxu0 0
    %1037 = vmatpush1.bf16.msra.mxu0 0
    %1038 = vmatprep.subr.bf16.mxu0 0
    %1039 = vmatpush1.bf16.msra.mxu0 %v1000
    %1040 = vmatprep.subr.bf16.mxu0 0
    %1041 = vmatpush2.bf16.msra.mxu0 0
    %1042 = vmatprep.subr.bf16.mxu0 0
    %1043 = vmatpush2.bf16.msra.mxu0 0
    %1044 = vmatprep.subr.bf16.mxu0 0
    %1045 = vmatpush2.bf16.msra.mxu0 0
    %1046 = vmatprep.subr.bf16.mxu0 0
    %1047 = vmatpush2.bf16.msra.mxu0 0
    %1048 = vmatprep.subr.bf16.mxu0 0
    %1049 = vmatpush2.bf16.msra.mxu0 0
    %1050 = vmatprep.subr.bf16.mxu0 0
    %1051 = vmatpush2.bf16.msra.mxu0 0
    %1052 = vmatprep.subr.bf16.mxu0 0
    %1053 = vmatpush2.bf16.msra.mxu0 0
    %1054 = vmatprep.subr.bf16.mxu0 0
    %1055 = vmatpush2.bf16.msra.mxu0 0
    %1056 = vmatprep.mubr.bf16.mxu0 0
    %1057 = vmatmul.mubr.bf16.gmra.mxu0 %v1019
    %v1058 = vpop.f32.mrf.mxu0
    %v1059 = vadd.f32 %v1003, %v1058
    %v1060 = vpop.f32.mrf.mxu0
    %v1061 = vpop.f32.mrf.mxu0
    %v1062 = vadd.f32 %v1007, %v1061
    %v1063 = vpop.f32.mrf.mxu0
    %1064 = vmatprep.mubr.bf16.mxu0 0
    %1065 = vmatmul.mubr.bf16.gmra.mxu0 %v1022
    %v1066 = vpop.f32.mrf.mxu0
    %v1067 = vadd.f32 %v1011, %v1066
    %v1068 = vpop.f32.mrf.mxu0
    %v1069 = vpop.f32.mrf.mxu0
    %v1070 = vadd.f32 %v1015, %v1069
    %v1071 = vpop.f32.mrf.mxu0
    %1072 = vdwg.mxu0
    %v1073 = vxor.u32 %v1059, 2147483648
    %v1074 = vxor.u32 %v1062, 2147483648
    %v1075 = vxor.u32 %v1067, 2147483648
    %v1076 = vxor.u32 %v1070, 2147483648
    %v1077 = vmul.f32 %v1073, 1.442695
    %v1078 = vpow.pop %v1077
    %v1079 = vmul.f32 %v1074, 1.442695
    %v1080 = vpow.pop %v1079
    %v1081 = vmul.f32 %v1075, 1.442695
    %v1082 = vpow.pop %v1081
    %v1083 = vmul.f32 %v1076, 1.442695
    %v1084 = vpow.pop %v1083
    %v1085 = vadd.f32 %v1078, 1.0
    %v1086 = vadd.f32 %v1080, 1.0
    %v1087 = vadd.f32 %v1082, 1.0
    %v1088 = vadd.f32 %v1084, 1.0
    %v1089 = vrcp.pop %v1085
    %v1090 = vmul.f32 1.0, %v1089
    %v1091 = vrcp.pop %v1086
    %v1092 = vmul.f32 1.0, %v1091
    %v1093 = vrcp.pop %v1087
    %v1094 = vmul.f32 1.0, %v1093
    %v1095 = vrcp.pop %v1088
    %v1096 = vmul.f32 1.0, %v1095
    %1098 = vset.pattern.permute.xlu0 0
    %1099 = vperm.xlu0 %1098, %v1090
    %v1100 = vpop.permute.xlu0 %1099
    %1103 = vset.pattern.permute.xlu0 0
    %1104 = vperm.xlu0 %1103, %v1092
    %v1105 = vpop.permute.xlu0 %1104
    %1108 = vset.pattern.permute.xlu0 0
    %1109 = vperm.xlu0 %1108, %v1094
    %v1110 = vpop.permute.xlu0 %1109
    %1113 = vset.pattern.permute.xlu0 0
    %1114 = vperm.xlu0 %1113, %v1096
    %v1115 = vpop.permute.xlu0 %1114
    %v1117 = vmul.f32 %v670, %v1100
    %v1118 = vmul.f32 %v672, %v1105
    %v1119 = vmul.f32 %v674, %v1110
    %v1120 = vmul.f32 %v676, %v1115
    %v1121 = vadd.f32 %v59, %v1117
    %v1122 = vadd.f32 %v60, %v1118
    %v1123 = vadd.f32 %v61, %v1119
    %v1124 = vadd.f32 %v62, %v1120
    %1125 = vst [vmem:[#allocation7] sm:$0xff] %v1121
    %1126 = vst [vmem:[#allocation7 + $0x8] sm:$0xff] %v1122
    %1127 = vst [vmem:[#allocation7 + $0x10] sm:$0xff] %v1123
    %1128 = vst [vmem:[#allocation7 + $0x18] sm:$0xff] %v1124
    %v1129 = vld [vmem:[%s63] sm:$0xff]
    %v1130 = vld [vmem:[%s63 + $0x8] sm:$0xff]
    %v1131 = vld [vmem:[%s63 + $0x10] sm:$0xff]
    %v1132 = vld [vmem:[%s63 + $0x18] sm:$0xff]
    %1133 = vset.pattern.permute.xlu0 1
    %1134 = vperm.xlu0 %1133, %v1090
    %v1135 = vpop.permute.xlu0 %1134
    %1137 = vset.pattern.permute.xlu0 1
    %1138 = vperm.xlu0 %1137, %v1092
    %v1139 = vpop.permute.xlu0 %1138
    %1141 = vset.pattern.permute.xlu0 1
    %1142 = vperm.xlu0 %1141, %v1094
    %v1143 = vpop.permute.xlu0 %1142
    %1145 = vset.pattern.permute.xlu0 1
    %1146 = vperm.xlu0 %1145, %v1096
    %v1147 = vpop.permute.xlu0 %1146
    %v1149 = vmul.f32 %v671, %v1135
    %v1150 = vmul.f32 %v673, %v1139
    %v1151 = vmul.f32 %v675, %v1143
    %v1152 = vmul.f32 %v677, %v1147
    %v1153 = vadd.f32 %v1129, %v1149
    %v1154 = vadd.f32 %v1130, %v1150
    %v1155 = vadd.f32 %v1131, %v1151
    %v1156 = vadd.f32 %v1132, %v1152
    %s1157 = scalar_lea.vmem [#allocation7], 32
    %1158 = vst [vmem:[%s1157] sm:$0xff] %v1153
    %1159 = vst [vmem:[%s1157 + $0x8] sm:$0xff] %v1154
    %1160 = vst [vmem:[%s1157 + $0x10] sm:$0xff] %v1155
    %1161 = vst [vmem:[%s1157 + $0x18] sm:$0xff] %v1156
    // Predicated region
    $region18: #{tpu_custom_call.1} parent=1 // pred_check
      _
    $region19: #{tpu_custom_call.1} parent=1 // pred_check_branch
      %1163 = sbr.rel (0) target = $region21
    $region20: #{tpu_custom_call.1} parent=1 // pred_region
      %s1165 = ssub.s32 1024, 1024
      %1166 = vsyncadd [#allocation4], %s1165
      %s1167 = sshll.u32 [#allocation7], 4
      %s1168 = int_to_ptr.vmem [resolvable:$true] %s1167
      %1173 = dma.vmem_to_hbm [thread:$0]  %s1168, 1024, %s2, [#allocation4], 128, 128, 8
    $region21: #{tpu_custom_call.1} parent=1 // pred_fallthru
      _
    // Predicated region
    $region22: #{tpu_custom_call.1} parent=1 // pred_check
      _
    $region23: #{tpu_custom_call.1} parent=1 // pred_check_branch
      %1175 = sbr.rel (0) target = $region25
    $region24: #{tpu_custom_call.1} parent=1 // pred_region
      %1176 = dma.done [#allocation4], 1024
    $region25: #{tpu_custom_call.1} parent=1 // pred_fallthru
      _
    %1177 = vsyncpa [#allocation3], 1
    %1178 = vsyncpa [#allocation6], 1
    %1179 = vsyncpa [#allocation4], 1

</llo_original>
